<compile_context>
chip_gen: v6e
topology: v6e:2x2x1
jax: 0.10.0
libtpu: 0.0.40
codegen_flags: <defaults>
</compile_context>

<pallas_src>
import functools

import jax
import jax.numpy as jnp
from jax import lax
from jax.experimental import pallas as pl
from jax.experimental.pallas import tpu as pltpu


def _bilinear_matrix(n_in: int, n_out: int) -> jnp.ndarray:
    """Interpolation matrix M (n_out, n_in) for align_corners=True bilinear."""
    i = jnp.arange(n_out, dtype=jnp.float32)
    if n_out == 1:
        src = jnp.zeros((n_out,), jnp.float32)
    else:
        src = i * (n_in - 1) / (n_out - 1)
    lo = jnp.clip(jnp.floor(src).astype(jnp.int32), 0, n_in - 1)
    hi = jnp.clip(lo + 1, 0, n_in - 1)
    frac = src - lo.astype(jnp.float32)
    m = jnp.zeros((n_out, n_in), jnp.float32)
    m = m.at[jnp.arange(n_out), lo].add(1.0 - frac)
    m = m.at[jnp.arange(n_out), hi].add(frac)
    return m


def _upsample_kernel(x1_ref, x2_ref, wup_ref, w1_ref, b1_ref, w2_ref, b2_ref,
                     mask_ref, o_ref,
                     cat_flat, mid_flat, patches1, patches2,
                     *, Wout, HW, C1, C2, Cm, Cout, base, L):
    f32 = jnp.float32
    bf16 = jnp.bfloat16
    Cin1 = C2 + C1

    # ---- bilinear x2 upsample (align_corners=True) as one lane-dense matmul --
    #   up[c, h*Wout+w] = sum_{h',w'} kron(Wh, Ww)[hw, h'w'] * x1[c, h'*Win+w']
    up = jnp.dot(x1_ref[0], wup_ref[...], preferred_element_type=f32)   # (C1, HW)

    # ---- fused concat([x2, up]) into one flat, row-padded VMEM buffer --------
    # Per channel row: [0:base) zeros | [base:base+HW) image | [..:L) zeros.
    # Only the (small) pad regions are zeroed; the interior is fully rewritten
    # every grid step.  Not gated on program_id==0 because scratch is per-core
    # and the (parallel) batch axis may be sharded across TensorCores.
    cat_flat[:, 0:base] = jnp.zeros((Cin1, base), f32)
    cat_flat[:, base + HW:L] = jnp.zeros((Cin1, L - base - HW), f32)
    cat_flat[0:C2, base:base + HW] = x2_ref[0]        # cat: x2 channels first
    cat_flat[C2:Cin1, base:base + HW] = up            # then upsampled x1

    mask_l = mask_ref[0:1, :]     # zero where w == 0       (left-edge taps)
    mask_r = mask_ref[1:2, :]     # zero where w == Wout-1  (right-edge taps)

    def im2col(src, n_ch, dst):
        # dst[tap*n_ch + c, h*Wout+w] = zero-padded src[c, h+dh-1, w+dw-1]
        for dh in range(3):
            for dw in range(3):
                tap = dh * 3 + dw
                s = base + (dh - 1) * Wout + (dw - 1)  # static, contiguous slice
                win = src[:, s:s + HW]                 # (n_ch, HW)
                if dw == 0:
                    win = win * mask_l
                elif dw == 2:
                    win = win * mask_r
                dst[tap * n_ch:(tap + 1) * n_ch, :] = win

    # ---- conv1 (3x3, pad=1) + ReLU: single (Cm x 9*Cin1)@(9*Cin1 x HW) matmul -
    # bf16 MXU operands, f32 accumulation (matches default TPU matmul numerics).
    im2col(cat_flat, Cin1, patches1)
    h1 = jnp.dot(w1_ref[...], patches1[...].astype(bf16),
                 preferred_element_type=f32)                           # (Cm, HW)
    h1 = jnp.maximum(h1 + b1_ref[...], 0.0)

    # ---- conv2 (3x3, pad=1) + ReLU -------------------------------------------
    mid_flat[:, 0:base] = jnp.zeros((Cm, base), f32)
    mid_flat[:, base + HW:L] = jnp.zeros((Cm, L - base - HW), f32)
    mid_flat[:, base:base + HW] = h1
    im2col(mid_flat, Cm, patches2)
    h2 = jnp.dot(w2_ref[...], patches2[...].astype(bf16),
                 preferred_element_type=f32)                           # (Cout, HW)

    # lane-dense output store: last dim HW is a multiple of 128 -> unmasked vst
    o_ref[0] = jnp.maximum(h2 + b2_ref[...], 0.0)


def upsample_forward(x1_nchw, x2_nchw, params):
    """UpSample.forward. Inputs/outputs are NCHW (PyTorch convention)."""
    w1, b1, w2, b2 = params                 # w1 (3,3,C2+C1,Cm), w2 (3,3,Cm,Cout)  HWIO
    B, C1, Hin, Win = x1_nchw.shape
    B2, C2, Hout, Wout = x2_nchw.shape
    Cm = w1.shape[-1]
    Cout = w2.shape[-1]
    assert B2 == B and Hout == 2 * Hin and Wout == 2 * Win
    assert w1.shape == (3, 3, C2 + C1, Cm) and w2.shape == (3, 3, Cm, Cout)

    HW = Hout * Wout
    HWin = Hin * Win
    Cin1 = C2 + C1
    base = ((Wout + 1 + 127) // 128) * 128  # lane-aligned left pad (>= Wout+1 zeros)
    L = base + HW + Wout + 1                # flat padded row length

    # Activation-side glue is free reshapes only (no transpose / pad).
    x1f = x1_nchw.reshape(B, C1, HWin).astype(jnp.float32)
    x2f = x2_nchw.reshape(B, C2, HW).astype(jnp.float32)

    # Small constants: bilinear Kronecker matrix + weights in matmul form.
    wh = _bilinear_matrix(Hin, Hout)                          # (Hout, Hin)
    ww = _bilinear_matrix(Win, Wout)                          # (Wout, Win)
    wupT = jnp.kron(wh, ww).T.astype(jnp.float32)             # (HWin, HW)
    w1m = jnp.transpose(w1, (3, 0, 1, 2)).reshape(Cm, 9 * Cin1).astype(jnp.bfloat16)
    w2m = jnp.transpose(w2, (3, 0, 1, 2)).reshape(Cout, 9 * Cm).astype(jnp.bfloat16)
    b1c = b1.reshape(Cm, 1).astype(jnp.float32)
    b2c = b2.reshape(Cout, 1).astype(jnp.float32)
    col = jnp.arange(HW, dtype=jnp.int32) % Wout
    edge_mask = jnp.stack([col != 0, col != Wout - 1]).astype(jnp.float32)  # (2, HW)

    kernel = functools.partial(_upsample_kernel, Wout=Wout, HW=HW, C1=C1, C2=C2,
                               Cm=Cm, Cout=Cout, base=base, L=L)

    # grid=(B,): trivially parallel over batch (both v7x TensorCores get work for
    # B>=2).  For B==1 at production sizes, tile Hout rows instead (and raise
    # vmem_limit_bytes / shrink the flat scratches to row tiles for v7x 64 MiB VMEM).
    out_flat = pl.pallas_call(
        kernel,
        out_shape=jax.ShapeDtypeStruct((B, Cout, HW), jnp.float32),
        grid_spec=pltpu.PrefetchScalarGridSpec(
            num_scalar_prefetch=0,
            grid=(B,),
            in_specs=[
                pl.BlockSpec((1, C1, HWin), lambda b: (b, 0, 0)),
                pl.BlockSpec((1, C2, HW), lambda b: (b, 0, 0)),
                pl.BlockSpec((HWin, HW), lambda b: (0, 0)),
                pl.BlockSpec((Cm, 9 * Cin1), lambda b: (0, 0)),
                pl.BlockSpec((Cm, 1), lambda b: (0, 0)),
                pl.BlockSpec((Cout, 9 * Cm), lambda b: (0, 0)),
                pl.BlockSpec((Cout, 1), lambda b: (0, 0)),
                pl.BlockSpec((2, HW), lambda b: (0, 0)),
            ],
            out_specs=pl.BlockSpec((1, Cout, HW), lambda b: (b, 0, 0)),
            scratch_shapes=[
                pltpu.VMEM((Cin1, L), jnp.float32),       # flat padded concat
                pltpu.VMEM((Cm, L), jnp.float32),         # flat padded mid
                pltpu.VMEM((9 * Cin1, HW), jnp.float32),  # im2col patches, conv1
                pltpu.VMEM((9 * Cm, HW), jnp.float32),    # im2col patches, conv2
            ],
        ),
        compiler_params=pltpu.CompilerParams(
            dimension_semantics=("parallel",)),
    )(x1f, x2f, wupT, w1m, b1c, w2m, b2c, edge_mask)

    # free reshape back to NCHW (contiguous, no data movement)
    return out_flat.reshape(B, Cout, Hout, Wout)


def upsample_reference(x1_nchw, x2_nchw, params):
    """Pure-JAX reference (spec semantics, used only to validate the kernel)."""
    w1, b1, w2, b2 = params
    B, C1, Hin, Win = x1_nchw.shape
    _, C2, Hout, Wout = x2_nchw.shape
    x1 = jnp.transpose(x1_nchw, (0, 2, 3, 1)).astype(jnp.float32)
    x2 = jnp.transpose(x2_nchw, (0, 2, 3, 1)).astype(jnp.float32)
    wh = _bilinear_matrix(Hin, Hout)
    ww = _bilinear_matrix(Win, Wout)
    up = jnp.einsum('ph,bhwc->bpwc', wh, x1)
    up = jnp.einsum('qw,bpwc->bpqc', ww, up)
    x = jnp.concatenate([x2, up], axis=-1)
    dn = ('NHWC', 'HWIO', 'NHWC')
    y = lax.conv_general_dilated(x, w1, (1, 1), 'SAME', dimension_numbers=dn) + b1
    y = jnp.maximum(y, 0.0)
    y = lax.conv_general_dilated(y, w2, (1, 1), 'SAME', dimension_numbers=dn) + b2
    y = jnp.maximum(y, 0.0)
    return jnp.transpose(y, (0, 3, 1, 2))


if __name__ == "__main__":
    # UpSample(in_channels=8, out_channels=4):
    #   x1: (B, in_channels, H, W), x2: (B, out_channels, 2H, 2W)
    B, Cin, Cout = 2, 8, 4
    Hin = Win = 8
    Hout, Wout = 2 * Hin, 2 * Win

    key = jax.random.PRNGKey(0)
    k_x1, k_x2, k_w1, k_b1, k_w2, k_b2 = jax.random.split(key, 6)

    x1 = jax.random.normal(k_x1, (B, Cin, Hin, Win), jnp.float32)
    x2 = jax.random.normal(k_x2, (B, Cout, Hout, Wout), jnp.float32)

    # Deterministic synthetic parameters (HWIO). First conv input-channel order
    # matches torch.cat((x2, up)): first Cout channels <-> x2, rest <-> up(x1).
    w1 = 0.1 * jax.random.normal(k_w1, (3, 3, Cout + Cin, Cout), jnp.float32)
    b1 = 0.05 * jax.random.normal(k_b1, (Cout,), jnp.float32)
    w2 = 0.1 * jax.random.normal(k_w2, (3, 3, Cout, Cout), jnp.float32)
    b2 = 0.05 * jax.random.normal(k_b2, (Cout,), jnp.float32)
    params = (w1, b1, w2, b2)

    out = jax.block_until_ready(upsample_forward(x1, x2, params))
    ref = upsample_reference(x1, x2, params)

    assert out.shape == (B, Cout, Hout, Wout), out.shape
    # Conv matmuls use bf16 MXU operands with f32 accumulation (standard TPU
    # matmul numerics), so compare against the f32 reference with a bf16-level
    # tolerance rather than 1e-4.
    assert bool(jnp.allclose(out, ref, atol=3e-2, rtol=3e-2)), (
        "mismatch vs reference: max abs err = "
        f"{float(jnp.max(jnp.abs(out - ref)))}")

    print("KERNEL_OK")
</pallas_src>

<mosaic_0001>
module attributes {stable_mosaic.version = 11 : i64} {
  func.func @_upsample_kernel(%arg0: i32, %arg1: memref<1x8x64xf32, #tpu.memory_space<vmem>>, %arg2: memref<1x4x256xf32, #tpu.memory_space<vmem>>, %arg3: memref<64x256xf32, #tpu.memory_space<vmem>>, %arg4: memref<4x108xbf16, #tpu.memory_space<vmem>>, %arg5: memref<4x1xf32, #tpu.memory_space<vmem>>, %arg6: memref<4x36xbf16, #tpu.memory_space<vmem>>, %arg7: memref<4x1xf32, #tpu.memory_space<vmem>>, %arg8: memref<2x256xf32, #tpu.memory_space<vmem>>, %arg9: memref<1x4x256xf32, #tpu.memory_space<vmem>>, %arg10: memref<12x401xf32, #tpu.memory_space<vmem>>, %arg11: memref<4x401xf32, #tpu.memory_space<vmem>>, %arg12: memref<108x256xf32, #tpu.memory_space<vmem>>, %arg13: memref<36x256xf32, #tpu.memory_space<vmem>>) attributes {dimension_semantics = [#tpu.dimension_semantics<parallel>], iteration_bounds = array<i64: 2>, scalar_prefetch = 0 : i64, scratch_operands = 4 : i64, tpu.core_type = #tpu.core_type<tc>, window_params = [{transform_indices = @transform_0, window_bounds = array<i64: 1, 8, 64>}, {transform_indices = @transform_1, window_bounds = array<i64: 1, 4, 256>}, {pipeline_mode = #tpu.pipeline_mode<synchronous>, transform_indices = @transform_2, window_bounds = array<i64: 64, 256>}, {pipeline_mode = #tpu.pipeline_mode<synchronous>, transform_indices = @transform_3, window_bounds = array<i64: 4, 108>}, {pipeline_mode = #tpu.pipeline_mode<synchronous>, transform_indices = @transform_4, window_bounds = array<i64: 4, 1>}, {pipeline_mode = #tpu.pipeline_mode<synchronous>, transform_indices = @transform_5, window_bounds = array<i64: 4, 36>}, {pipeline_mode = #tpu.pipeline_mode<synchronous>, transform_indices = @transform_6, window_bounds = array<i64: 4, 1>}, {pipeline_mode = #tpu.pipeline_mode<synchronous>, transform_indices = @transform_7, window_bounds = array<i64: 2, 256>}, {transform_indices = @transform_8, window_bounds = array<i64: 1, 4, 256>}]} {
    %c0 = arith.constant 0 : index
    %c0_0 = arith.constant 0 : index
    %c0_1 = arith.constant 0 : index
    %0 = vector.load %arg1[%c0, %c0_0, %c0_1] : memref<1x8x64xf32, #tpu.memory_space<vmem>>, vector<1x8x64xf32>
    %1 = vector.shape_cast %0 : vector<1x8x64xf32> to vector<8x64xf32>
    %c0_2 = arith.constant 0 : index
    %c0_3 = arith.constant 0 : index
    %2 = vector.load %arg3[%c0_2, %c0_3] : memref<64x256xf32, #tpu.memory_space<vmem>>, vector<64x256xf32>
    %cst = arith.constant dense<0.000000e+00> : vector<8x256xf32>
    %3 = tpu.matmul %1, %2, %cst {dimension_numbers = #tpu.dot_dimension_numbers<[1], [0], [0], [1], [0, 0, 1, 1], [], []>} : vector<8x64xf32>, vector<64x256xf32>, vector<8x256xf32> -> vector<8x256xf32>
    %cst_4 = arith.constant 0.000000e+00 : f32
    %4 = vector.broadcast %cst_4 : f32 to vector<12x128xf32>
    %c0_5 = arith.constant 0 : index
    %c0_6 = arith.constant 0 : index
    %5 = vector.load %arg10[%c0_5, %c0_6] : memref<12x401xf32, #tpu.memory_space<vmem>>, vector<12x128xf32>
    tpu.vector_store %arg10[%c0_5, %c0_6], %4 {strides = array<i32>} : memref<12x401xf32, #tpu.memory_space<vmem>>, vector<12x128xf32>,
    %cst_7 = arith.constant 0.000000e+00 : f32
    %6 = vector.broadcast %cst_7 : f32 to vector<12x17xf32>
    %c0_8 = arith.constant 0 : index
    %c384 = arith.constant 384 : index
    %7 = vector.load %arg10[%c0_8, %c384] : memref<12x401xf32, #tpu.memory_space<vmem>>, vector<12x17xf32>
    tpu.vector_store %arg10[%c0_8, %c384], %6 {strides = array<i32>} : memref<12x401xf32, #tpu.memory_space<vmem>>, vector<12x17xf32>,
    %c0_9 = arith.constant 0 : index
    %c0_10 = arith.constant 0 : index
    %c0_11 = arith.constant 0 : index
    %8 = vector.load %arg2[%c0_9, %c0_10, %c0_11] : memref<1x4x256xf32, #tpu.memory_space<vmem>>, vector<1x4x256xf32>
    %9 = vector.shape_cast %8 : vector<1x4x256xf32> to vector<4x256xf32>
    %c0_12 = arith.constant 0 : index
    %c128 = arith.constant 128 : index
    %10 = vector.load %arg10[%c0_12, %c128] : memref<12x401xf32, #tpu.memory_space<vmem>>, vector<4x256xf32>
    tpu.vector_store %arg10[%c0_12, %c128], %9 {strides = array<i32>} : memref<12x401xf32, #tpu.memory_space<vmem>>, vector<4x256xf32>,
    %c4 = arith.constant 4 : index
    %c128_13 = arith.constant 128 : index
    %11 = vector.load %arg10[%c4, %c128_13] : memref<12x401xf32, #tpu.memory_space<vmem>>, vector<8x256xf32>
    tpu.vector_store %arg10[%c4, %c128_13], %3 {strides = array<i32>} : memref<12x401xf32, #tpu.memory_space<vmem>>, vector<8x256xf32>,
    %c0_14 = arith.constant 0 : index
    %c0_15 = arith.constant 0 : index
    %12 = vector.load %arg8[%c0_14, %c0_15] : memref<2x256xf32, #tpu.memory_space<vmem>>, vector<1x256xf32>
    %c1 = arith.constant 1 : index
    %c0_16 = arith.constant 0 : index
    %13 = vector.load %arg8[%c1, %c0_16] : memref<2x256xf32, #tpu.memory_space<vmem>>, vector<1x256xf32>
    %c0_17 = arith.constant 0 : index
    %c111 = arith.constant 111 : index
    %14 = vector.load %arg10[%c0_17, %c111] : memref<12x401xf32, #tpu.memory_space<vmem>>, vector<12x256xf32>
    %15 = vector.broadcast %12 : vector<1x256xf32> to vector<12x256xf32>
    %16 = arith.mulf %14, %15 : vector<12x256xf32>
    %c0_18 = arith.constant 0 : index
    %c0_19 = arith.constant 0 : index
    %17 = vector.load %arg12[%c0_18, %c0_19] : memref<108x256xf32, #tpu.memory_space<vmem>>, vector<12x256xf32>
    tpu.vector_store %arg12[%c0_18, %c0_19], %16 {strides = array<i32>} : memref<108x256xf32, #tpu.memory_space<vmem>>, vector<12x256xf32>,
    %c0_20 = arith.constant 0 : index
    %c112 = arith.constant 112 : index
    %18 = vector.load %arg10[%c0_20, %c112] : memref<12x401xf32, #tpu.memory_space<vmem>>, vector<12x256xf32>
    %c12 = arith.constant 12 : index
    %c0_21 = arith.constant 0 : index
    %19 = vector.load %arg12[%c12, %c0_21] : memref<108x256xf32, #tpu.memory_space<vmem>>, vector<12x256xf32>
    tpu.vector_store %arg12[%c12, %c0_21], %18 {strides = array<i32>} : memref<108x256xf32, #tpu.memory_space<vmem>>, vector<12x256xf32>,
    %c0_22 = arith.constant 0 : index
    %c113 = arith.constant 113 : index
    %20 = vector.load %arg10[%c0_22, %c113] : memref<12x401xf32, #tpu.memory_space<vmem>>, vector<12x256xf32>
    %21 = vector.broadcast %13 : vector<1x256xf32> to vector<12x256xf32>
    %22 = arith.mulf %20, %21 : vector<12x256xf32>
    %c24 = arith.constant 24 : index
    %c0_23 = arith.constant 0 : index
    %23 = vector.load %arg12[%c24, %c0_23] : memref<108x256xf32, #tpu.memory_space<vmem>>, vector<12x256xf32>
    tpu.vector_store %arg12[%c24, %c0_23], %22 {strides = array<i32>} : memref<108x256xf32, #tpu.memory_space<vmem>>, vector<12x256xf32>,
    %c0_24 = arith.constant 0 : index
    %c127 = arith.constant 127 : index
    %24 = vector.load %arg10[%c0_24, %c127] : memref<12x401xf32, #tpu.memory_space<vmem>>, vector<12x256xf32>
    %25 = vector.broadcast %12 : vector<1x256xf32> to vector<12x256xf32>
    %26 = arith.mulf %24, %25 : vector<12x256xf32>
    %c36 = arith.constant 36 : index
    %c0_25 = arith.constant 0 : index
    %27 = vector.load %arg12[%c36, %c0_25] : memref<108x256xf32, #tpu.memory_space<vmem>>, vector<12x256xf32>
    tpu.vector_store %arg12[%c36, %c0_25], %26 {strides = array<i32>} : memref<108x256xf32, #tpu.memory_space<vmem>>, vector<12x256xf32>,
    %c0_26 = arith.constant 0 : index
    %c128_27 = arith.constant 128 : index
    %28 = vector.load %arg10[%c0_26, %c128_27] : memref<12x401xf32, #tpu.memory_space<vmem>>, vector<12x256xf32>
    %c48 = arith.constant 48 : index
    %c0_28 = arith.constant 0 : index
    %29 = vector.load %arg12[%c48, %c0_28] : memref<108x256xf32, #tpu.memory_space<vmem>>, vector<12x256xf32>
    tpu.vector_store %arg12[%c48, %c0_28], %28 {strides = array<i32>} : memref<108x256xf32, #tpu.memory_space<vmem>>, vector<12x256xf32>,
    %c0_29 = arith.constant 0 : index
    %c129 = arith.constant 129 : index
    %30 = vector.load %arg10[%c0_29, %c129] : memref<12x401xf32, #tpu.memory_space<vmem>>, vector<12x256xf32>
    %31 = vector.broadcast %13 : vector<1x256xf32> to vector<12x256xf32>
    %32 = arith.mulf %30, %31 : vector<12x256xf32>
    %c60 = arith.constant 60 : index
    %c0_30 = arith.constant 0 : index
    %33 = vector.load %arg12[%c60, %c0_30] : memref<108x256xf32, #tpu.memory_space<vmem>>, vector<12x256xf32>
    tpu.vector_store %arg12[%c60, %c0_30], %32 {strides = array<i32>} : memref<108x256xf32, #tpu.memory_space<vmem>>, vector<12x256xf32>,
    %c0_31 = arith.constant 0 : index
    %c143 = arith.constant 143 : index
    %34 = vector.load %arg10[%c0_31, %c143] : memref<12x401xf32, #tpu.memory_space<vmem>>, vector<12x256xf32>
    %35 = vector.broadcast %12 : vector<1x256xf32> to vector<12x256xf32>
    %36 = arith.mulf %34, %35 : vector<12x256xf32>
    %c72 = arith.constant 72 : index
    %c0_32 = arith.constant 0 : index
    %37 = vector.load %arg12[%c72, %c0_32] : memref<108x256xf32, #tpu.memory_space<vmem>>, vector<12x256xf32>
    tpu.vector_store %arg12[%c72, %c0_32], %36 {strides = array<i32>} : memref<108x256xf32, #tpu.memory_space<vmem>>, vector<12x256xf32>,
    %c0_33 = arith.constant 0 : index
    %c144 = arith.constant 144 : index
    %38 = vector.load %arg10[%c0_33, %c144] : memref<12x401xf32, #tpu.memory_space<vmem>>, vector<12x256xf32>
    %c84 = arith.constant 84 : index
    %c0_34 = arith.constant 0 : index
    %39 = vector.load %arg12[%c84, %c0_34] : memref<108x256xf32, #tpu.memory_space<vmem>>, vector<12x256xf32>
    tpu.vector_store %arg12[%c84, %c0_34], %38 {strides = array<i32>} : memref<108x256xf32, #tpu.memory_space<vmem>>, vector<12x256xf32>,
    %c0_35 = arith.constant 0 : index
    %c145 = arith.constant 145 : index
    %40 = vector.load %arg10[%c0_35, %c145] : memref<12x401xf32, #tpu.memory_space<vmem>>, vector<12x256xf32>
    %41 = vector.broadcast %13 : vector<1x256xf32> to vector<12x256xf32>
    %42 = arith.mulf %40, %41 : vector<12x256xf32>
    %c96 = arith.constant 96 : index
    %c0_36 = arith.constant 0 : index
    %43 = vector.load %arg12[%c96, %c0_36] : memref<108x256xf32, #tpu.memory_space<vmem>>, vector<12x256xf32>
    tpu.vector_store %arg12[%c96, %c0_36], %42 {strides = array<i32>} : memref<108x256xf32, #tpu.memory_space<vmem>>, vector<12x256xf32>,
    %c0_37 = arith.constant 0 : index
    %c0_38 = arith.constant 0 : index
    %44 = vector.load %arg4[%c0_37, %c0_38] : memref<4x108xbf16, #tpu.memory_space<vmem>>, vector<4x108xbf16>
    %c0_39 = arith.constant 0 : index
    %c0_40 = arith.constant 0 : index
    %45 = vector.load %arg12[%c0_39, %c0_40] : memref<108x256xf32, #tpu.memory_space<vmem>>, vector<108x256xf32>
    %46 = arith.truncf %45 : vector<108x256xf32> to vector<108x256xbf16>
    %cst_41 = arith.constant dense<0.000000e+00> : vector<4x256xf32>
    %47 = tpu.matmul %44, %46, %cst_41 {dimension_numbers = #tpu.dot_dimension_numbers<[1], [0], [0], [1], [0, 0, 1, 1], [], []>} : vector<4x108xbf16>, vector<108x256xbf16>, vector<4x256xf32> -> vector<4x256xf32>
    %c0_42 = arith.constant 0 : index
    %c0_43 = arith.constant 0 : index
    %48 = vector.load %arg5[%c0_42, %c0_43] : memref<4x1xf32, #tpu.memory_space<vmem>>, vector<4x1xf32>
    %49 = vector.broadcast %48 : vector<4x1xf32> to vector<4x256xf32>
    %50 = arith.addf %47, %49 : vector<4x256xf32>
    %cst_44 = arith.constant 0.000000e+00 : f32
    %51 = vector.broadcast %cst_44 : f32 to vector<4x256xf32>
    %52 = arith.maximumf %50, %51 : vector<4x256xf32>
    %cst_45 = arith.constant 0.000000e+00 : f32
    %53 = vector.broadcast %cst_45 : f32 to vector<4x128xf32>
    %c0_46 = arith.constant 0 : index
    %c0_47 = arith.constant 0 : index
    %54 = vector.load %arg11[%c0_46, %c0_47] : memref<4x401xf32, #tpu.memory_space<vmem>>, vector<4x128xf32>
    tpu.vector_store %arg11[%c0_46, %c0_47], %53 {strides = array<i32>} : memref<4x401xf32, #tpu.memory_space<vmem>>, vector<4x128xf32>,
    %cst_48 = arith.constant 0.000000e+00 : f32
    %55 = vector.broadcast %cst_48 : f32 to vector<4x17xf32>
    %c0_49 = arith.constant 0 : index
    %c384_50 = arith.constant 384 : index
    %56 = vector.load %arg11[%c0_49, %c384_50] : memref<4x401xf32, #tpu.memory_space<vmem>>, vector<4x17xf32>
    tpu.vector_store %arg11[%c0_49, %c384_50], %55 {strides = array<i32>} : memref<4x401xf32, #tpu.memory_space<vmem>>, vector<4x17xf32>,
    %c0_51 = arith.constant 0 : index
    %c128_52 = arith.constant 128 : index
    %57 = vector.load %arg11[%c0_51, %c128_52] : memref<4x401xf32, #tpu.memory_space<vmem>>, vector<4x256xf32>
    tpu.vector_store %arg11[%c0_51, %c128_52], %52 {strides = array<i32>} : memref<4x401xf32, #tpu.memory_space<vmem>>, vector<4x256xf32>,
    %c0_53 = arith.constant 0 : index
    %c111_54 = arith.constant 111 : index
    %58 = vector.load %arg11[%c0_53, %c111_54] : memref<4x401xf32, #tpu.memory_space<vmem>>, vector<4x256xf32>
    %59 = vector.broadcast %12 : vector<1x256xf32> to vector<4x256xf32>
    %60 = arith.mulf %58, %59 : vector<4x256xf32>
    %c0_55 = arith.constant 0 : index
    %c0_56 = arith.constant 0 : index
    %61 = vector.load %arg13[%c0_55, %c0_56] : memref<36x256xf32, #tpu.memory_space<vmem>>, vector<4x256xf32>
    tpu.vector_store %arg13[%c0_55, %c0_56], %60 {strides = array<i32>} : memref<36x256xf32, #tpu.memory_space<vmem>>, vector<4x256xf32>,
    %c0_57 = arith.constant 0 : index
    %c112_58 = arith.constant 112 : index
    %62 = vector.load %arg11[%c0_57, %c112_58] : memref<4x401xf32, #tpu.memory_space<vmem>>, vector<4x256xf32>
    %c4_59 = arith.constant 4 : index
    %c0_60 = arith.constant 0 : index
    %63 = vector.load %arg13[%c4_59, %c0_60] : memref<36x256xf32, #tpu.memory_space<vmem>>, vector<4x256xf32>
    tpu.vector_store %arg13[%c4_59, %c0_60], %62 {strides = array<i32>} : memref<36x256xf32, #tpu.memory_space<vmem>>, vector<4x256xf32>,
    %c0_61 = arith.constant 0 : index
    %c113_62 = arith.constant 113 : index
    %64 = vector.load %arg11[%c0_61, %c113_62] : memref<4x401xf32, #tpu.memory_space<vmem>>, vector<4x256xf32>
    %65 = vector.broadcast %13 : vector<1x256xf32> to vector<4x256xf32>
    %66 = arith.mulf %64, %65 : vector<4x256xf32>
    %c8 = arith.constant 8 : index
    %c0_63 = arith.constant 0 : index
    %67 = vector.load %arg13[%c8, %c0_63] : memref<36x256xf32, #tpu.memory_space<vmem>>, vector<4x256xf32>
    tpu.vector_store %arg13[%c8, %c0_63], %66 {strides = array<i32>} : memref<36x256xf32, #tpu.memory_space<vmem>>, vector<4x256xf32>,
    %c0_64 = arith.constant 0 : index
    %c127_65 = arith.constant 127 : index
    %68 = vector.load %arg11[%c0_64, %c127_65] : memref<4x401xf32, #tpu.memory_space<vmem>>, vector<4x256xf32>
    %69 = vector.broadcast %12 : vector<1x256xf32> to vector<4x256xf32>
    %70 = arith.mulf %68, %69 : vector<4x256xf32>
    %c12_66 = arith.constant 12 : index
    %c0_67 = arith.constant 0 : index
    %71 = vector.load %arg13[%c12_66, %c0_67] : memref<36x256xf32, #tpu.memory_space<vmem>>, vector<4x256xf32>
    tpu.vector_store %arg13[%c12_66, %c0_67], %70 {strides = array<i32>} : memref<36x256xf32, #tpu.memory_space<vmem>>, vector<4x256xf32>,
    %c0_68 = arith.constant 0 : index
    %c128_69 = arith.constant 128 : index
    %72 = vector.load %arg11[%c0_68, %c128_69] : memref<4x401xf32, #tpu.memory_space<vmem>>, vector<4x256xf32>
    %c16 = arith.constant 16 : index
    %c0_70 = arith.constant 0 : index
    %73 = vector.load %arg13[%c16, %c0_70] : memref<36x256xf32, #tpu.memory_space<vmem>>, vector<4x256xf32>
    tpu.vector_store %arg13[%c16, %c0_70], %72 {strides = array<i32>} : memref<36x256xf32, #tpu.memory_space<vmem>>, vector<4x256xf32>,
    %c0_71 = arith.constant 0 : index
    %c129_72 = arith.constant 129 : index
    %74 = vector.load %arg11[%c0_71, %c129_72] : memref<4x401xf32, #tpu.memory_space<vmem>>, vector<4x256xf32>
    %75 = vector.broadcast %13 : vector<1x256xf32> to vector<4x256xf32>
    %76 = arith.mulf %74, %75 : vector<4x256xf32>
    %c20 = arith.constant 20 : index
    %c0_73 = arith.constant 0 : index
    %77 = vector.load %arg13[%c20, %c0_73] : memref<36x256xf32, #tpu.memory_space<vmem>>, vector<4x256xf32>
    tpu.vector_store %arg13[%c20, %c0_73], %76 {strides = array<i32>} : memref<36x256xf32, #tpu.memory_space<vmem>>, vector<4x256xf32>,
    %c0_74 = arith.constant 0 : index
    %c143_75 = arith.constant 143 : index
    %78 = vector.load %arg11[%c0_74, %c143_75] : memref<4x401xf32, #tpu.memory_space<vmem>>, vector<4x256xf32>
    %79 = vector.broadcast %12 : vector<1x256xf32> to vector<4x256xf32>
    %80 = arith.mulf %78, %79 : vector<4x256xf32>
    %c24_76 = arith.constant 24 : index
    %c0_77 = arith.constant 0 : index
    %81 = vector.load %arg13[%c24_76, %c0_77] : memref<36x256xf32, #tpu.memory_space<vmem>>, vector<4x256xf32>
    tpu.vector_store %arg13[%c24_76, %c0_77], %80 {strides = array<i32>} : memref<36x256xf32, #tpu.memory_space<vmem>>, vector<4x256xf32>,
    %c0_78 = arith.constant 0 : index
    %c144_79 = arith.constant 144 : index
    %82 = vector.load %arg11[%c0_78, %c144_79] : memref<4x401xf32, #tpu.memory_space<vmem>>, vector<4x256xf32>
    %c28 = arith.constant 28 : index
    %c0_80 = arith.constant 0 : index
    %83 = vector.load %arg13[%c28, %c0_80] : memref<36x256xf32, #tpu.memory_space<vmem>>, vector<4x256xf32>
    tpu.vector_store %arg13[%c28, %c0_80], %82 {strides = array<i32>} : memref<36x256xf32, #tpu.memory_space<vmem>>, vector<4x256xf32>,
    %c0_81 = arith.constant 0 : index
    %c145_82 = arith.constant 145 : index
    %84 = vector.load %arg11[%c0_81, %c145_82] : memref<4x401xf32, #tpu.memory_space<vmem>>, vector<4x256xf32>
    %85 = vector.broadcast %13 : vector<1x256xf32> to vector<4x256xf32>
    %86 = arith.mulf %84, %85 : vector<4x256xf32>
    %c32 = arith.constant 32 : index
    %c0_83 = arith.constant 0 : index
    %87 = vector.load %arg13[%c32, %c0_83] : memref<36x256xf32, #tpu.memory_space<vmem>>, vector<4x256xf32>
    tpu.vector_store %arg13[%c32, %c0_83], %86 {strides = array<i32>} : memref<36x256xf32, #tpu.memory_space<vmem>>, vector<4x256xf32>,
    %c0_84 = arith.constant 0 : index
    %c0_85 = arith.constant 0 : index
    %88 = vector.load %arg6[%c0_84, %c0_85] : memref<4x36xbf16, #tpu.memory_space<vmem>>, vector<4x36xbf16>
    %c0_86 = arith.constant 0 : index
    %c0_87 = arith.constant 0 : index
    %89 = vector.load %arg13[%c0_86, %c0_87] : memref<36x256xf32, #tpu.memory_space<vmem>>, vector<36x256xf32>
    %90 = arith.truncf %89 : vector<36x256xf32> to vector<36x256xbf16>
    %cst_88 = arith.constant dense<0.000000e+00> : vector<4x256xf32>
    %91 = tpu.matmul %88, %90, %cst_88 {dimension_numbers = #tpu.dot_dimension_numbers<[1], [0], [0], [1], [0, 0, 1, 1], [], []>} : vector<4x36xbf16>, vector<36x256xbf16>, vector<4x256xf32> -> vector<4x256xf32>
    %c0_89 = arith.constant 0 : index
    %c0_90 = arith.constant 0 : index
    %92 = vector.load %arg7[%c0_89, %c0_90] : memref<4x1xf32, #tpu.memory_space<vmem>>, vector<4x1xf32>
    %93 = vector.broadcast %92 : vector<4x1xf32> to vector<4x256xf32>
    %94 = arith.addf %91, %93 : vector<4x256xf32>
    %cst_91 = arith.constant 0.000000e+00 : f32
    %95 = vector.broadcast %cst_91 : f32 to vector<4x256xf32>
    %96 = arith.maximumf %94, %95 : vector<4x256xf32>
    %c0_92 = arith.constant 0 : index
    %c0_93 = arith.constant 0 : index
    %c0_94 = arith.constant 0 : index
    %97 = vector.load %arg9[%c0_92, %c0_93, %c0_94] : memref<1x4x256xf32, #tpu.memory_space<vmem>>, vector<1x4x256xf32>
    %98 = vector.shape_cast %97 : vector<1x4x256xf32> to vector<4x256xf32>
    %99 = vector.shape_cast %96 : vector<4x256xf32> to vector<1x4x256xf32>
    tpu.vector_store %arg9[%c0_92, %c0_93, %c0_94], %99 {strides = array<i32>} : memref<1x4x256xf32, #tpu.memory_space<vmem>>, vector<1x4x256xf32>,
    return
  }
  func.func @transform_0(%arg0: i32) -> (i32, i32, i32) {
    %c0_i32 = arith.constant 0 : i32
    %c0_i32_0 = arith.constant 0 : i32
    %c0_i32_1 = arith.constant 0 : i32
    return %arg0, %c0_i32, %c0_i32_0 : i32, i32, i32
  }
  func.func @transform_1(%arg0: i32) -> (i32, i32, i32) {
    %c0_i32 = arith.constant 0 : i32
    %c0_i32_0 = arith.constant 0 : i32
    %c0_i32_1 = arith.constant 0 : i32
    return %arg0, %c0_i32, %c0_i32_0 : i32, i32, i32
  }
  func.func @transform_2(%arg0: i32) -> (i32, i32) {
    %c0_i32 = arith.constant 0 : i32
    %c0_i32_0 = arith.constant 0 : i32
    %c0_i32_1 = arith.constant 0 : i32
    return %c0_i32, %c0_i32_0 : i32, i32
  }
  func.func @transform_3(%arg0: i32) -> (i32, i32) {
    %c0_i32 = arith.constant 0 : i32
    %c0_i32_0 = arith.constant 0 : i32
    %c0_i32_1 = arith.constant 0 : i32
    return %c0_i32, %c0_i32_0 : i32, i32
  }
  func.func @transform_4(%arg0: i32) -> (i32, i32) {
    %c0_i32 = arith.constant 0 : i32
    %c0_i32_0 = arith.constant 0 : i32
    %c0_i32_1 = arith.constant 0 : i32
    return %c0_i32, %c0_i32_0 : i32, i32
  }
  func.func @transform_5(%arg0: i32) -> (i32, i32) {
    %c0_i32 = arith.constant 0 : i32
    %c0_i32_0 = arith.constant 0 : i32
    %c0_i32_1 = arith.constant 0 : i32
    return %c0_i32, %c0_i32_0 : i32, i32
  }
  func.func @transform_6(%arg0: i32) -> (i32, i32) {
    %c0_i32 = arith.constant 0 : i32
    %c0_i32_0 = arith.constant 0 : i32
    %c0_i32_1 = arith.constant 0 : i32
    return %c0_i32, %c0_i32_0 : i32, i32
  }
  func.func @transform_7(%arg0: i32) -> (i32, i32) {
    %c0_i32 = arith.constant 0 : i32
    %c0_i32_0 = arith.constant 0 : i32
    %c0_i32_1 = arith.constant 0 : i32
    return %c0_i32, %c0_i32_0 : i32, i32
  }
  func.func @transform_8(%arg0: i32) -> (i32, i32, i32) {
    %c0_i32 = arith.constant 0 : i32
    %c0_i32_0 = arith.constant 0 : i32
    %c0_i32_1 = arith.constant 0 : i32
    return %arg0, %c0_i32, %c0_i32_0 : i32, i32, i32
  }
}

</mosaic_0001>

<llo_original>
// kernel: tpu_custom_call.1
$region0: #{tpu_custom_call.1}
  #allocation0 [shape = 'u32[]', space=smem, size = 0x4, offset = 0x4, fixed_abs, tag = 'smem constant byte address 0x4 - core index']
  #allocation1 [shape = 'u32[144,128]{1,0:T(1,128)}', space=vmem, size = 0x12000, scoped, tag = 'internal scratch']
  #allocation2 [shape = 'f32[12,401]{1,0:T(8,128)}', space=vmem, size = 0x8000, scoped, tag = 'scratch operand']
  #allocation3 [shape = 'f32[4,401]{1,0:T(4,128)}', space=vmem, size = 0x2000, scoped, tag = 'scratch operand']
  #allocation4 [shape = 'f32[108,256]{1,0:T(8,128)}', space=vmem, size = 0x1c000, scoped, tag = 'scratch operand']
  #allocation5 [shape = 'f32[36,256]{1,0:T(8,128)}', space=vmem, size = 0xa000, scoped, tag = 'scratch operand']
  %s0 = inlined_call_operand.hbm [shape: f32[2,8,64], index: 0, kind: input, shape index: {}]
  %s1 = inlined_call_operand.hbm [shape: f32[2,4,256], index: 1, kind: input, shape index: {}]
  %s2 = inlined_call_operand.hbm [shape: f32[64,256], index: 2, kind: input, shape index: {}]
  %s3 = inlined_call_operand.vmem [shape: bf16[4,108], index: 3, kind: input, shape index: {}]
  %s4 = inlined_call_operand.vmem [shape: f32[4,1], index: 4, kind: input, shape index: {}]
  %s5 = inlined_call_operand.vmem [shape: bf16[4,36], index: 5, kind: input, shape index: {}]
  %s6 = inlined_call_operand.vmem [shape: f32[4,1], index: 6, kind: input, shape index: {}]
  %s7 = inlined_call_operand.vmem [shape: f32[2,256], index: 7, kind: input, shape index: {}]
  %s8 = inlined_call_operand.hbm [shape: f32[2,4,256], index: 8, kind: output, shape index: {}]
  %s9 = sld [smem:[#allocation0]]
  $region77: #{tpu_custom_call.1} parent=0
    _
  %s11 = ssub.s32 1, %s9
  %s12 = scalar_select 0, %s11, %s9
  $region1: #{tpu_custom_call.1} parent=0
    #allocation6 [shape = 'u8[8192]{0}', space=vmem, size = 0x2000, scoped, tag = 'input window, operand 0']
    #allocation7 [shape = 's32[2]{0}', space=sflag, size = 0x8, scoped, tag = 'scoped memory for tpu_custom_call.1']
    #allocation8 [shape = 's32[2]{0}', space=sflag, size = 0x8, scoped, tag = 'scoped memory for tpu_custom_call.1']
    #allocation9 [shape = 'u8[8192]{0}', space=vmem, size = 0x2000, scoped, tag = 'input window, operand 1']
    #allocation10 [shape = 's32[2]{0}', space=sflag, size = 0x8, scoped, tag = 'scoped memory for tpu_custom_call.1']
    #allocation11 [shape = 'u8[65536]{0}', space=vmem, size = 0x10000, scoped, tag = 'input window, operand 2, single buffered']
    #allocation12 [shape = 'u8[8192]{0}', space=vmem, size = 0x2000, scoped, tag = 'output window, operand 0']
    %13 = vsyncpa [#allocation7], 0
    %s14 = scalar_lea.sflag [#allocation7], 1
    %15 = vsyncpa %s14, 0
    %16 = vsyncpa [#allocation10], 0
    %s17 = scalar_lea.sflag [#allocation10], 1
    %18 = vsyncpa %s17, 0
    %19 = vsyncpa [#allocation8], 0
    %s20 = scalar_lea.sflag [#allocation8], 1
    %21 = vsyncpa %s20, 0
    loop: start=0, step=1, limit=4
    $region2: #{tpu_custom_call.1} parent=1 // loop_pre_header
      _
    $region3: #{tpu_custom_call.1} parent=1 // loop_header
      %s23 = sphi 0, %s27
      %p24 = scmp.ge.s32.totalorder %s23, 4
      %s33 = sphi 0, %s35
      %s36 = sphi 0, %s33
      %s37 = sphi 0, %s36
      %s53 = sphi 0, %s37
      %s59 = sphi 0, %s61
      %s62 = sphi 0, %s59
      %s63 = sphi 0, %s62
      %s79 = sphi 0, %s63
      %s83 = sphi 0, %s83
      %s85 = sphi 0, %s83
      %s86 = sphi 0, %s85
      %s100 = sphi 0, %s86
      %s104 = sphi 0, %s104
      %s106 = sphi 0, %s104
      %s107 = sphi 0, %s106
      %s121 = sphi 0, %s107
      %s125 = sphi 0, %s125
      %s127 = sphi 0, %s125
      %s128 = sphi 0, %s127
      %s142 = sphi 0, %s128
      %s146 = sphi 0, %s146
      %s148 = sphi 0, %s146
      %s149 = sphi 0, %s148
      %s163 = sphi 0, %s149
      %s167 = sphi 0, %s167
      %s169 = sphi 0, %s167
      %s170 = sphi 0, %s169
      %s184 = sphi 0, %s170
      %s188 = sphi 0, %s188
      %s190 = sphi 0, %s188
      %s191 = sphi 0, %s190
      %s205 = sphi 0, %s191
      %s211 = sphi 0, %s213
      %s214 = sphi 0, %s211
      %s215 = sphi 0, %s214
      %s231 = sphi 0, %s215
    $region4: #{tpu_custom_call.1} parent=1 // loop_header_branch
      %26 = sbr.rel (%p24) target = $region8
    $region5: #{tpu_custom_call.1} parent=1 // loop_body
      %s28 = ssub.s32 %s23, 1
      %s29 = ssub.s32 %s23, 2
      %s30 = sadd.s32 %s23, 1
      %s31 = ssub.s32 %s23, %s30
      %p32 = scmp.eq.s32.totalorder %s31, 0
      %s34 = sadd.s32 %s33, 1
      %s35 = scalar_select %p32, %s33, %s34
      %p38 = pneg %p32
      %p39 = scmp.eq.s32.totalorder %s23, 1
      %p40 = por %p38, %p39
      %p41 = scmp.ne.s32.totalorder %s33, %s36
      %p42 = scmp.eq.s32.totalorder %s23, 0
      %p43 = por %p41, %p42
      %p44 = scmp.ne.s32.totalorder %s33, %s36
      %p45 = scmp.eq.s32.totalorder %s28, 1
      %p46 = por %p44, %p45
      %p47 = scmp.ne.s32.totalorder %s36, %s37
      %p48 = scmp.eq.s32.totalorder %s28, 0
      %p49 = por %p47, %p48
      %p50 = scmp.ne.s32.totalorder %s36, %s37
      %p51 = scmp.eq.s32.totalorder %s29, 1
      %p52 = por %p50, %p51
      %p54 = scmp.ne.s32.totalorder %s37, %s53
      %p55 = scmp.eq.s32.totalorder %s29, 0
      %p56 = por %p54, %p55
      %s57 = ssub.s32 %s23, %s30
      %p58 = scmp.eq.s32.totalorder %s57, 0
      %s60 = sadd.s32 %s59, 1
      %s61 = scalar_select %p58, %s59, %s60
      %p64 = pneg %p58
      %p65 = scmp.eq.s32.totalorder %s23, 1
      %p66 = por %p64, %p65
      %p67 = scmp.ne.s32.totalorder %s59, %s62
      %p68 = scmp.eq.s32.totalorder %s23, 0
      %p69 = por %p67, %p68
      %p70 = scmp.ne.s32.totalorder %s59, %s62
      %p71 = scmp.eq.s32.totalorder %s28, 1
      %p72 = por %p70, %p71
      %p73 = scmp.ne.s32.totalorder %s62, %s63
      %p74 = scmp.eq.s32.totalorder %s28, 0
      %p75 = por %p73, %p74
      %p76 = scmp.ne.s32.totalorder %s62, %s63
      %p77 = scmp.eq.s32.totalorder %s29, 1
      %p78 = por %p76, %p77
      %p80 = scmp.ne.s32.totalorder %s63, %s79
      %p81 = scmp.eq.s32.totalorder %s29, 0
      %p82 = por %p80, %p81
      %s84 = sadd.s32 %s83, 1
      %p87 = scmp.eq.s32.totalorder %s23, 1
      %p88 = scmp.ne.s32.totalorder %s83, %s85
      %p89 = scmp.eq.s32.totalorder %s23, 0
      %p90 = por %p88, %p89
      %p91 = scmp.ne.s32.totalorder %s83, %s85
      %p92 = scmp.eq.s32.totalorder %s28, 1
      %p93 = por %p91, %p92
      %p94 = scmp.ne.s32.totalorder %s85, %s86
      %p95 = scmp.eq.s32.totalorder %s28, 0
      %p96 = por %p94, %p95
      %p97 = scmp.ne.s32.totalorder %s85, %s86
      %p98 = scmp.eq.s32.totalorder %s29, 1
      %p99 = por %p97, %p98
      %p101 = scmp.ne.s32.totalorder %s86, %s100
      %p102 = scmp.eq.s32.totalorder %s29, 0
      %p103 = por %p101, %p102
      %s105 = sadd.s32 %s104, 1
      %p108 = scmp.eq.s32.totalorder %s23, 1
      %p109 = scmp.ne.s32.totalorder %s104, %s106
      %p110 = scmp.eq.s32.totalorder %s23, 0
      %p111 = por %p109, %p110
      %p112 = scmp.ne.s32.totalorder %s104, %s106
      %p113 = scmp.eq.s32.totalorder %s28, 1
      %p114 = por %p112, %p113
      %p115 = scmp.ne.s32.totalorder %s106, %s107
      %p116 = scmp.eq.s32.totalorder %s28, 0
      %p117 = por %p115, %p116
      %p118 = scmp.ne.s32.totalorder %s106, %s107
      %p119 = scmp.eq.s32.totalorder %s29, 1
      %p120 = por %p118, %p119
      %p122 = scmp.ne.s32.totalorder %s107, %s121
      %p123 = scmp.eq.s32.totalorder %s29, 0
      %p124 = por %p122, %p123
      %s126 = sadd.s32 %s125, 1
      %p129 = scmp.eq.s32.totalorder %s23, 1
      %p130 = scmp.ne.s32.totalorder %s125, %s127
      %p131 = scmp.eq.s32.totalorder %s23, 0
      %p132 = por %p130, %p131
      %p133 = scmp.ne.s32.totalorder %s125, %s127
      %p134 = scmp.eq.s32.totalorder %s28, 1
      %p135 = por %p133, %p134
      %p136 = scmp.ne.s32.totalorder %s127, %s128
      %p137 = scmp.eq.s32.totalorder %s28, 0
      %p138 = por %p136, %p137
      %p139 = scmp.ne.s32.totalorder %s127, %s128
      %p140 = scmp.eq.s32.totalorder %s29, 1
      %p141 = por %p139, %p140
      %p143 = scmp.ne.s32.totalorder %s128, %s142
      %p144 = scmp.eq.s32.totalorder %s29, 0
      %p145 = por %p143, %p144
      %s147 = sadd.s32 %s146, 1
      %p150 = scmp.eq.s32.totalorder %s23, 1
      %p151 = scmp.ne.s32.totalorder %s146, %s148
      %p152 = scmp.eq.s32.totalorder %s23, 0
      %p153 = por %p151, %p152
      %p154 = scmp.ne.s32.totalorder %s146, %s148
      %p155 = scmp.eq.s32.totalorder %s28, 1
      %p156 = por %p154, %p155
      %p157 = scmp.ne.s32.totalorder %s148, %s149
      %p158 = scmp.eq.s32.totalorder %s28, 0
      %p159 = por %p157, %p158
      %p160 = scmp.ne.s32.totalorder %s148, %s149
      %p161 = scmp.eq.s32.totalorder %s29, 1
      %p162 = por %p160, %p161
      %p164 = scmp.ne.s32.totalorder %s149, %s163
      %p165 = scmp.eq.s32.totalorder %s29, 0
      %p166 = por %p164, %p165
      %s168 = sadd.s32 %s167, 1
      %p171 = scmp.eq.s32.totalorder %s23, 1
      %p172 = scmp.ne.s32.totalorder %s167, %s169
      %p173 = scmp.eq.s32.totalorder %s23, 0
      %p174 = por %p172, %p173
      %p175 = scmp.ne.s32.totalorder %s167, %s169
      %p176 = scmp.eq.s32.totalorder %s28, 1
      %p177 = por %p175, %p176
      %p178 = scmp.ne.s32.totalorder %s169, %s170
      %p179 = scmp.eq.s32.totalorder %s28, 0
      %p180 = por %p178, %p179
      %p181 = scmp.ne.s32.totalorder %s169, %s170
      %p182 = scmp.eq.s32.totalorder %s29, 1
      %p183 = por %p181, %p182
      %p185 = scmp.ne.s32.totalorder %s170, %s184
      %p186 = scmp.eq.s32.totalorder %s29, 0
      %p187 = por %p185, %p186
      %s189 = sadd.s32 %s188, 1
      %p192 = scmp.eq.s32.totalorder %s23, 1
      %p193 = scmp.ne.s32.totalorder %s188, %s190
      %p194 = scmp.eq.s32.totalorder %s23, 0
      %p195 = por %p193, %p194
      %p196 = scmp.ne.s32.totalorder %s188, %s190
      %p197 = scmp.eq.s32.totalorder %s28, 1
      %p198 = por %p196, %p197
      %p199 = scmp.ne.s32.totalorder %s190, %s191
      %p200 = scmp.eq.s32.totalorder %s28, 0
      %p201 = por %p199, %p200
      %p202 = scmp.ne.s32.totalorder %s190, %s191
      %p203 = scmp.eq.s32.totalorder %s29, 1
      %p204 = por %p202, %p203
      %p206 = scmp.ne.s32.totalorder %s191, %s205
      %p207 = scmp.eq.s32.totalorder %s29, 0
      %p208 = por %p206, %p207
      %s209 = ssub.s32 %s23, %s30
      %p210 = scmp.eq.s32.totalorder %s209, 0
      %s212 = sadd.s32 %s211, 1
      %s213 = scalar_select %p210, %s211, %s212
      %p216 = pneg %p210
      %p217 = scmp.eq.s32.totalorder %s23, 1
      %p218 = por %p216, %p217
      %p219 = scmp.ne.s32.totalorder %s211, %s214
      %p220 = scmp.eq.s32.totalorder %s23, 0
      %p221 = por %p219, %p220
      %p222 = scmp.ne.s32.totalorder %s211, %s214
      %p223 = scmp.eq.s32.totalorder %s28, 1
      %p224 = por %p222, %p223
      %p225 = scmp.ne.s32.totalorder %s214, %s215
      %p226 = scmp.eq.s32.totalorder %s28, 0
      %p227 = por %p225, %p226
      %p228 = scmp.ne.s32.totalorder %s214, %s215
      %p229 = scmp.eq.s32.totalorder %s29, 1
      %p230 = por %p228, %p229
      %p232 = scmp.ne.s32.totalorder %s215, %s231
      %p233 = scmp.eq.s32.totalorder %s29, 0
      %p234 = por %p232, %p233
      %p235 = scmp.le.s32.totalorder 1, %s23
      %p236 = scmp.lt.s32.totalorder %s23, 3
      %p237 = pnand %p235, %p236
      %p238 = pneg %p237
      // Predicated region
      $region9: #{tpu_custom_call.1} parent=5 // pred_check
        _
      $region10: #{tpu_custom_call.1} parent=5 // pred_check_branch
        %240 = sbr.rel (%p237) target = $region12
      $region11: #{tpu_custom_call.1} parent=5 // pred_region
        %s241 = ssub.s32 %s23, 1
        // Predicated region
        $region13: #{tpu_custom_call.1} parent=11 // pred_check
          %p242 = pneg %p96
        $region14: #{tpu_custom_call.1} parent=11 // pred_check_branch
          %244 = sbr.rel (%p242) target = $region16
        $region15: #{tpu_custom_call.1} parent=11 // pred_region
          %s246 = ssub.s32 2048, 2048
          %247 = vsyncadd [#allocation10], %s246
          %s248 = sshll.u32 [#allocation11], 4
          %s249 = int_to_ptr.vmem [resolvable:$true] %s248
          %254 = dma.hbm_to_vmem [thread:$0]  %s2, 2048, %s249, [#allocation10], 256, 256, 16
        $region16: #{tpu_custom_call.1} parent=11 // pred_fallthru
          _
        // Predicated region
        $region17: #{tpu_custom_call.1} parent=11 // pred_check
          %p255 = pneg %p117
        $region18: #{tpu_custom_call.1} parent=11 // pred_check_branch
          %257 = sbr.rel (%p255) target = $region20
        $region19: #{tpu_custom_call.1} parent=11 // pred_region
          _
        $region20: #{tpu_custom_call.1} parent=11 // pred_fallthru
          _
        // Predicated region
        $region21: #{tpu_custom_call.1} parent=11 // pred_check
          %p258 = pneg %p138
        $region22: #{tpu_custom_call.1} parent=11 // pred_check_branch
          %260 = sbr.rel (%p258) target = $region24
        $region23: #{tpu_custom_call.1} parent=11 // pred_region
          _
        $region24: #{tpu_custom_call.1} parent=11 // pred_fallthru
          _
        // Predicated region
        $region25: #{tpu_custom_call.1} parent=11 // pred_check
          %p261 = pneg %p159
        $region26: #{tpu_custom_call.1} parent=11 // pred_check_branch
          %263 = sbr.rel (%p261) target = $region28
        $region27: #{tpu_custom_call.1} parent=11 // pred_region
          _
        $region28: #{tpu_custom_call.1} parent=11 // pred_fallthru
          _
        // Predicated region
        $region29: #{tpu_custom_call.1} parent=11 // pred_check
          %p264 = pneg %p180
        $region30: #{tpu_custom_call.1} parent=11 // pred_check_branch
          %266 = sbr.rel (%p264) target = $region32
        $region31: #{tpu_custom_call.1} parent=11 // pred_region
          _
        $region32: #{tpu_custom_call.1} parent=11 // pred_fallthru
          _
        // Predicated region
        $region33: #{tpu_custom_call.1} parent=11 // pred_check
          %p267 = pneg %p201
        $region34: #{tpu_custom_call.1} parent=11 // pred_check_branch
          %269 = sbr.rel (%p267) target = $region36
        $region35: #{tpu_custom_call.1} parent=11 // pred_region
          _
        $region36: #{tpu_custom_call.1} parent=11 // pred_fallthru
          _
      $region12: #{tpu_custom_call.1} parent=5 // pred_fallthru
        _
      %p270 = scmp.lt.s32.totalorder %s23, 2
      // Predicated region
      $region37: #{tpu_custom_call.1} parent=5 // pred_check
        %p271 = pneg %p270
      $region38: #{tpu_custom_call.1} parent=5 // pred_check_branch
        %273 = sbr.rel (%p271) target = $region40
      $region39: #{tpu_custom_call.1} parent=5 // pred_region
        // Predicated region
        $region41: #{tpu_custom_call.1} parent=39 // pred_check
          %p274 = pneg %p43
        $region42: #{tpu_custom_call.1} parent=39 // pred_check_branch
          %276 = sbr.rel (%p274) target = $region44
        $region43: #{tpu_custom_call.1} parent=39 // pred_region
          %s277 = sand.u32 %s33, 1
          %s278 = scalar_lea.sflag [#allocation7], %s277
          %s279 = sand.u32 %s33, 1
          %s280 = smul.addr %s279, 8
          %s281 = scalar_lea.vmem [#allocation6], %s280
          %s283 = ssub.s32 128, 128
          %284 = vsyncadd %s278, %s283
          %s285 = smul.addr %s23, 128
          %s286 = scalar_lea.hbm %s0, %s285
          %s288 = sshll.u32 %s281, 4
          %s289 = int_to_ptr.vmem [resolvable:$true] %s288
          %291 = dma.hbm_to_vmem [thread:$0]  %s286, 128, %s289, %s278
        $region44: #{tpu_custom_call.1} parent=39 // pred_fallthru
          _
        // Predicated region
        $region45: #{tpu_custom_call.1} parent=39 // pred_check
          %p292 = pneg %p69
        $region46: #{tpu_custom_call.1} parent=39 // pred_check_branch
          %294 = sbr.rel (%p292) target = $region48
        $region47: #{tpu_custom_call.1} parent=39 // pred_region
          %s295 = sand.u32 %s23, 1
          %s296 = scalar_lea.sflag [#allocation10], %s295
          %s297 = sand.u32 %s59, 1
          %s298 = smul.addr %s297, 8
          %s299 = scalar_lea.vmem [#allocation9], %s298
          %s301 = ssub.s32 128, 128
          %302 = vsyncadd %s296, %s301
          %s303 = smul.addr %s23, 2
          %s304 = smul.addr %s303, 64
          %s305 = scalar_lea.hbm %s1, %s304
          %s307 = sshll.u32 %s299, 4
          %s308 = int_to_ptr.vmem [resolvable:$true] %s307
          %310 = dma.hbm_to_vmem [thread:$0]  %s305, 128, %s308, %s296
        $region48: #{tpu_custom_call.1} parent=39 // pred_fallthru
          _
      $region40: #{tpu_custom_call.1} parent=5 // pred_fallthru
        _
      %p311 = scmp.le.s32.totalorder 1, %s23
      %p312 = scmp.lt.s32.totalorder %s23, 3
      %p313 = pnand %p311, %p312
      %p314 = pneg %p313
      // Predicated region
      $region49: #{tpu_custom_call.1} parent=5 // pred_check
        _
      $region50: #{tpu_custom_call.1} parent=5 // pred_check_branch
        %316 = sbr.rel (%p313) target = $region52
      $region51: #{tpu_custom_call.1} parent=5 // pred_region
        %s317 = ssub.s32 %s23, 1
        %s318 = sand.u32 %s36, 1
        %s319 = scalar_lea.sflag [#allocation7], %s318
        %s320 = sand.u32 %s36, 1
        %s321 = smul.addr %s320, 8
        %s322 = scalar_lea.vmem [#allocation6], %s321
        // Predicated region
        $region53: #{tpu_custom_call.1} parent=51 // pred_check
          %p323 = pneg %p49
        $region54: #{tpu_custom_call.1} parent=51 // pred_check_branch
          %325 = sbr.rel (%p323) target = $region56
        $region55: #{tpu_custom_call.1} parent=51 // pred_region
          %326 = dma.done %s319, 128
        $region56: #{tpu_custom_call.1} parent=51 // pred_fallthru
          _
        %s327 = sand.u32 %s28, 1
        %s328 = scalar_lea.sflag [#allocation10], %s327
        %s329 = sand.u32 %s62, 1
        %s330 = smul.addr %s329, 8
        %s331 = scalar_lea.vmem [#allocation9], %s330
        // Predicated region
        $region57: #{tpu_custom_call.1} parent=51 // pred_check
          %p332 = pneg %p75
        $region58: #{tpu_custom_call.1} parent=51 // pred_check_branch
          %334 = sbr.rel (%p332) target = $region60
        $region59: #{tpu_custom_call.1} parent=51 // pred_region
          %335 = dma.done %s328, 128
        $region60: #{tpu_custom_call.1} parent=51 // pred_fallthru
          _
        // Predicated region
        $region61: #{tpu_custom_call.1} parent=51 // pred_check
          %p336 = pneg %p96
        $region62: #{tpu_custom_call.1} parent=51 // pred_check_branch
          %338 = sbr.rel (%p336) target = $region64
        $region63: #{tpu_custom_call.1} parent=51 // pred_region
          %339 = dma.done [#allocation10], 2048
        $region64: #{tpu_custom_call.1} parent=51 // pred_fallthru
          _
        %s340 = sand.u32 %s36, 1
        %s341 = scalar_lea.sflag [#allocation7], %s340
        %s342 = sand.u32 %s36, 1
        %s343 = smul.addr %s342, 8
        %s344 = scalar_lea.vmem [#allocation6], %s343
        %p345 = pneg %p49
        %p346 = pneg %p46
        %s347 = sand.u32 %s28, 1
        %s348 = scalar_lea.sflag [#allocation10], %s347
        %s349 = sand.u32 %s62, 1
        %s350 = smul.addr %s349, 8
        %s351 = scalar_lea.vmem [#allocation9], %s350
        %p352 = pneg %p75
        %p353 = pneg %p72
        %p354 = pneg %p96
        %p355 = pneg %p93
        %p356 = pneg %p117
        %p357 = pneg %p114
        %p358 = pneg %p138
        %p359 = pneg %p135
        %p360 = pneg %p159
        %p361 = pneg %p156
        %p362 = pneg %p180
        %p363 = pneg %p177
        %p364 = pneg %p201
        %p365 = pneg %p198
        %p366 = pneg %p227
        %p367 = pneg %p224
        %s368 = sand.u32 %s214, 1
        %s369 = scalar_lea.sflag [#allocation8], %s368
        %s370 = sand.u32 %s214, 1
        %s371 = smul.addr %s370, 8
        %s372 = scalar_lea.vmem [#allocation12], %s371
        %v374 = vld [vmem:[%s322] sm:$0xff]
        %v375 = vld [vmem:[#allocation11] sm:$0xff]
        %v376 = vld [vmem:[#allocation11 + $0x8] sm:$0xff]
        %v377 = vld [vmem:[#allocation11 + $0x10] sm:$0xff]
        %v378 = vld [vmem:[#allocation11 + $0x18] sm:$0xff]
        %v379 = vld [vmem:[#allocation11 + $0x20] sm:$0xff]
        %v380 = vld [vmem:[#allocation11 + $0x28] sm:$0xff]
        %v381 = vld [vmem:[#allocation11 + $0x30] sm:$0xff]
        %v382 = vld [vmem:[#allocation11 + $0x38] sm:$0xff]
        %v383 = vld [vmem:[#allocation11 + $0x40] sm:$0xff]
        %v384 = vld [vmem:[#allocation11 + $0x48] sm:$0xff]
        %v385 = vld [vmem:[#allocation11 + $0x50] sm:$0xff]
        %v386 = vld [vmem:[#allocation11 + $0x58] sm:$0xff]
        %v387 = vld [vmem:[#allocation11 + $0x60] sm:$0xff]
        %v388 = vld [vmem:[#allocation11 + $0x68] sm:$0xff]
        %v389 = vld [vmem:[#allocation11 + $0x70] sm:$0xff]
        %v390 = vld [vmem:[#allocation11 + $0x78] sm:$0xff]
        %vm391 = vcmask 523264
        %v393 = vsel %vm391, %v374, 0
        %395 = vmatprep.subr.mxu0 0.0
        %396 = vmatpush1.msra.mxu0 0.0
        %397 = vmatprep.subr.mxu0 0.0
        %398 = vmatpush1.msra.mxu0 0.0
        %399 = vmatprep.subr.mxu0 0.0
        %400 = vmatpush1.msra.mxu0 0.0
        %401 = vmatprep.subr.mxu0 0.0
        %402 = vmatpush1.msra.mxu0 0.0
        %403 = vmatprep.subr.mxu0 0.0
        %404 = vmatpush1.msra.mxu0 0.0
        %405 = vmatprep.subr.mxu0 0.0
        %406 = vmatpush1.msra.mxu0 0.0
        %407 = vmatprep.subr.mxu0 0.0
        %408 = vmatpush1.msra.mxu0 0.0
        %409 = vmatprep.subr.mxu0 0.0
        %410 = vmatpush1.msra.mxu0 0.0
        %411 = vmatprep.subr.mxu0 %v390
        %412 = vmatpush1.msra.mxu0 %v389
        %413 = vmatprep.subr.mxu0 %v388
        %414 = vmatpush1.msra.mxu0 %v387
        %415 = vmatprep.subr.mxu0 %v386
        %416 = vmatpush1.msra.mxu0 %v385
        %417 = vmatprep.subr.mxu0 %v384
        %418 = vmatpush1.msra.mxu0 %v383
        %419 = vmatprep.subr.mxu0 %v382
        %420 = vmatpush1.msra.mxu0 %v381
        %421 = vmatprep.subr.mxu0 %v380
        %422 = vmatpush1.msra.mxu0 %v379
        %423 = vmatprep.subr.mxu0 %v378
        %424 = vmatpush1.msra.mxu0 %v377
        %425 = vmatprep.subr.mxu0 %v376
        %426 = vmatpush1.msra.mxu0 %v375
        %427 = vmatprep.subr.mxu0 0.0
        %428 = vmatpush2.msra.mxu0 0.0
        %429 = vmatprep.subr.mxu0 0.0
        %430 = vmatpush2.msra.mxu0 0.0
        %431 = vmatprep.subr.mxu0 0.0
        %432 = vmatpush2.msra.mxu0 0.0
        %433 = vmatprep.subr.mxu0 0.0
        %434 = vmatpush2.msra.mxu0 0.0
        %435 = vmatprep.subr.mxu0 0.0
        %436 = vmatpush2.msra.mxu0 0.0
        %437 = vmatprep.subr.mxu0 0.0
        %438 = vmatpush2.msra.mxu0 0.0
        %439 = vmatprep.subr.mxu0 0.0
        %440 = vmatpush2.msra.mxu0 0.0
        %441 = vmatprep.subr.mxu0 0.0
        %442 = vmatpush2.msra.mxu0 0.0
        %443 = vmatprep.subr.mxu0 0.0
        %444 = vmatpush2.msra.mxu0 0.0
        %445 = vmatprep.subr.mxu0 0.0
        %446 = vmatpush2.msra.mxu0 0.0
        %447 = vmatprep.subr.mxu0 0.0
        %448 = vmatpush2.msra.mxu0 0.0
        %449 = vmatprep.subr.mxu0 0.0
        %450 = vmatpush2.msra.mxu0 0.0
        %451 = vmatprep.subr.mxu0 0.0
        %452 = vmatpush2.msra.mxu0 0.0
        %453 = vmatprep.subr.mxu0 0.0
        %454 = vmatpush2.msra.mxu0 0.0
        %455 = vmatprep.subr.mxu0 0.0
        %456 = vmatpush2.msra.mxu0 0.0
        %457 = vmatprep.subr.mxu0 0.0
        %458 = vmatpush2.msra.mxu0 0.0
        %459 = vmatprep.mubr.f32.mxu0 0.0
        %460 = vmatmul.mubr.f32.gmra.mxu0 %v393
        %v461 = vpop.f32.mrf.mxu0
        %v462 = vadd.f32 0.0, %v461
        %v463 = vpop.f32.mrf.mxu0
        %v464 = vadd.f32 0.0, %v463
        %465 = vdwg.mxu0
        %466 = vst [vmem:[#allocation2] sm:$0xff] 0.0
        %467 = vst [vmem:[#allocation2 + $0x20] sm:$0xf] 0.0
        %vm468 = vcmask 138240
        %469 = vst.msk [vmem:[#allocation2 + $0x18] sm:$0xff] %vm468, 0.0
        %vm470 = vcmask 134144
        %471 = vst.msk [vmem:[#allocation2 + $0x38] sm:$0xf] %vm470, 0.0
        %v472 = vld [vmem:[%s331] sm:$0xff]
        %v474 = vcombine.high %v472, %v472
        %476 = vst [vmem:[#allocation2 + $0x8] sm:$0xf] %v472
        %477 = vst [vmem:[#allocation2 + $0x10] sm:$0xf] %v474
        %v480 = vrot.slane %v462, 4
        %v481 = vrot.slane %v464, 4
        %484 = vst [vmem:[#allocation2 + $0x8] sm:$0xf0] %v480
        %485 = vst [vmem:[#allocation2 + $0x10] sm:$0xf0] %v481
        %486 = vst [vmem:[#allocation2 + $0x28] sm:$0xf] %v480
        %487 = vst [vmem:[#allocation2 + $0x30] sm:$0xf] %v481
        %v488 = vld [vmem:[%s7] ss:$2 sm:$0x3]
        %s489 = scalar_lea.vmem %s7, 1
        %v490 = vld [vmem:[%s489] ss:$2 sm:$0x3]
        %v491 = vld [vmem:[#allocation2] sm:$0xff]
        %v492 = vld [vmem:[#allocation2 + $0x8] sm:$0xff]
        %v493 = vld [vmem:[#allocation2 + $0x10] sm:$0xff]
        %v494 = vld [vmem:[#allocation2 + $0x20] sm:$0xf]
        %v495 = vld [vmem:[#allocation2 + $0x28] sm:$0xf]
        %v496 = vld [vmem:[#allocation2 + $0x30] sm:$0xf]
        %v498 = vlaneseq
        %v499 = vshrl.u32 %v498, 7
        %v500 = vsub.s32 0, %v499
        %v501 = vrot.slane %v488, %v500
        %v502 = vlaneseq
        %v503 = vshrl.u32 %v502, 7
        %v504 = vsub.s32 1, %v503
        %v505 = vrot.slane %v488, %v504
        %506 = vrot.lane.b32.xlu0 %v501, 111
        %v507 = vpop.permute.xlu0 %506
        %508 = vrot.lane.b32.xlu0 %v505, 111
        %v509 = vpop.permute.xlu0 %508
        %vm510 = vcmask 908288
        %v511 = vsel %vm510, %v507, %v509
        %v515 = vmul.f32 %v491, %v507
        %v516 = vmul.f32 %v492, %v511
        %v517 = vmul.f32 %v493, %v509
        %v518 = vmul.f32 %v494, %v507
        %v519 = vmul.f32 %v495, %v511
        %v520 = vmul.f32 %v496, %v509
        %527 = vrot.lane.b32.xlu0 %v515, 17
        %v528 = vpop.permute.xlu0 %527
        %529 = vrot.lane.b32.xlu0 %v516, 17
        %v530 = vpop.permute.xlu0 %529
        %531 = vrot.lane.b32.xlu0 %v517, 17
        %v532 = vpop.permute.xlu0 %531
        %533 = vrot.lane.b32.xlu0 %v518, 17
        %v534 = vpop.permute.xlu0 %533
        %535 = vrot.lane.b32.xlu0 %v519, 17
        %v536 = vpop.permute.xlu0 %535
        %537 = vrot.lane.b32.xlu0 %v520, 17
        %v538 = vpop.permute.xlu0 %537
        %v539 = vsel %vm468, %v528, %v530
        %v540 = vsel %vm468, %v530, %v532
        %v541 = vsel %vm468, %v534, %v536
        %v542 = vsel %vm468, %v536, %v538
        %547 = vst [vmem:[#allocation4] sm:$0xff] %v539
        %548 = vst [vmem:[#allocation4 + $0x8] sm:$0xff] %v540
        %549 = vst [vmem:[#allocation4 + $0x10] sm:$0xf] %v541
        %550 = vst [vmem:[#allocation4 + $0x18] sm:$0xf] %v542
        %v551 = vld [vmem:[#allocation2] sm:$0xff]
        %v552 = vld [vmem:[#allocation2 + $0x8] sm:$0xff]
        %v553 = vld [vmem:[#allocation2 + $0x10] sm:$0xff]
        %v554 = vld [vmem:[#allocation2 + $0x20] sm:$0xf]
        %v555 = vld [vmem:[#allocation2 + $0x28] sm:$0xf]
        %v556 = vld [vmem:[#allocation2 + $0x30] sm:$0xf]
        %vm563 = vcmask 1043456
        %v564 = vrot.slane %v551, 4
        %v565 = vrot.slane %v552, 4
        %v566 = vrot.slane %v553, 4
        %v567 = vrot.slane %v554, 4
        %v568 = vsel %vm563, %v564, %v567
        %v569 = vrot.slane %v555, 4
        %v570 = vsel %vm563, %v565, %v569
        %v571 = vrot.slane %v556, 4
        %v572 = vsel %vm563, %v566, %v571
        %573 = vrot.lane.b32.xlu0 %v564, 16
        %v574 = vpop.permute.xlu0 %573
        %575 = vrot.lane.b32.xlu0 %v565, 16
        %v576 = vpop.permute.xlu0 %575
        %577 = vrot.lane.b32.xlu0 %v566, 16
        %v578 = vpop.permute.xlu0 %577
        %579 = vrot.lane.b32.xlu0 %v568, 16
        %v580 = vpop.permute.xlu0 %579
        %581 = vrot.lane.b32.xlu0 %v570, 16
        %v582 = vpop.permute.xlu0 %581
        %583 = vrot.lane.b32.xlu0 %v572, 16
        %v584 = vpop.permute.xlu0 %583
        %vm585 = vcmask 130048
        %v586 = vsel %vm585, %v574, %v576
        %v587 = vsel %vm585, %v576, %v578
        %v588 = vsel %vm585, %v580, %v582
        %v589 = vsel %vm585, %v582, %v584
        %594 = vst [vmem:[#allocation4 + $0x10] sm:$0xf0] %v586
        %595 = vst [vmem:[#allocation4 + $0x18] sm:$0xf0] %v587
        %596 = vst [vmem:[#allocation4 + $0x20] sm:$0xff] %v588
        %597 = vst [vmem:[#allocation4 + $0x28] sm:$0xff] %v589
        %v598 = vld [vmem:[#allocation2] sm:$0xff]
        %v599 = vld [vmem:[#allocation2 + $0x8] sm:$0xff]
        %v600 = vld [vmem:[#allocation2 + $0x10] sm:$0xff]
        %v601 = vld [vmem:[#allocation2 + $0x20] sm:$0xf]
        %v602 = vld [vmem:[#allocation2 + $0x28] sm:$0xf]
        %v603 = vld [vmem:[#allocation2 + $0x30] sm:$0xf]
        %v605 = vlaneseq
        %v606 = vshrl.u32 %v605, 7
        %v607 = vsub.s32 0, %v606
        %v608 = vrot.slane %v490, %v607
        %v609 = vlaneseq
        %v610 = vshrl.u32 %v609, 7
        %v611 = vsub.s32 1, %v610
        %v612 = vrot.slane %v490, %v611
        %613 = vrot.lane.b32.xlu0 %v608, 113
        %v614 = vpop.permute.xlu0 %613
        %615 = vrot.lane.b32.xlu0 %v612, 113
        %v616 = vpop.permute.xlu0 %615
        %vm617 = vcmask 924672
        %v618 = vsel %vm617, %v614, %v616
        %v622 = vmul.f32 %v598, %v614
        %v623 = vmul.f32 %v599, %v618
        %v624 = vmul.f32 %v600, %v616
        %v625 = vmul.f32 %v601, %v614
        %v626 = vmul.f32 %v602, %v618
        %v627 = vmul.f32 %v603, %v616
        %634 = vrot.lane.b32.xlu0 %v622, 15
        %v635 = vpop.permute.xlu0 %634
        %636 = vrot.lane.b32.xlu0 %v623, 15
        %v637 = vpop.permute.xlu0 %636
        %638 = vrot.lane.b32.xlu0 %v624, 15
        %v639 = vpop.permute.xlu0 %638
        %640 = vrot.lane.b32.xlu0 %v625, 15
        %v641 = vpop.permute.xlu0 %640
        %642 = vrot.lane.b32.xlu0 %v626, 15
        %v643 = vpop.permute.xlu0 %642
        %644 = vrot.lane.b32.xlu0 %v627, 15
        %v645 = vpop.permute.xlu0 %644
        %vm646 = vcmask 121856
        %v647 = vsel %vm646, %v635, %v637
        %v648 = vsel %vm646, %v637, %v639
        %v649 = vsel %vm646, %v641, %v643
        %v650 = vsel %vm646, %v643, %v645
        %655 = vst [vmem:[#allocation4 + $0x30] sm:$0xff] %v647
        %656 = vst [vmem:[#allocation4 + $0x38] sm:$0xff] %v648
        %657 = vst [vmem:[#allocation4 + $0x40] sm:$0xf] %v649
        %658 = vst [vmem:[#allocation4 + $0x48] sm:$0xf] %v650
        %v659 = vld [vmem:[#allocation2] sm:$0xff]
        %v660 = vld [vmem:[#allocation2 + $0x8] sm:$0xff]
        %v661 = vld [vmem:[#allocation2 + $0x10] sm:$0xff]
        %v662 = vld [vmem:[#allocation2 + $0x20] sm:$0xf]
        %v663 = vld [vmem:[#allocation2 + $0x28] sm:$0xf]
        %v664 = vld [vmem:[#allocation2 + $0x30] sm:$0xf]
        %665 = vrot.lane.b32.xlu0 %v501, 127
        %v666 = vpop.permute.xlu0 %665
        %667 = vrot.lane.b32.xlu0 %v505, 127
        %v668 = vpop.permute.xlu0 %667
        %vm669 = vcmask 1039360
        %v670 = vsel %vm669, %v666, %v668
        %v674 = vmul.f32 %v659, %v666
        %v675 = vmul.f32 %v660, %v670
        %v676 = vmul.f32 %v661, %v668
        %v677 = vmul.f32 %v662, %v666
        %v678 = vmul.f32 %v663, %v670
        %v679 = vmul.f32 %v664, %v668
        %v686 = vrot.slane %v674, 4
        %v687 = vrot.slane %v675, 4
        %v688 = vrot.slane %v676, 4
        %v689 = vrot.slane %v677, 4
        %v690 = vsel %vm563, %v686, %v689
        %v691 = vrot.slane %v678, 4
        %v692 = vsel %vm563, %v687, %v691
        %v693 = vrot.slane %v679, 4
        %v694 = vsel %vm563, %v688, %v693
        %695 = vrot.lane.b32.xlu0 %v686, 1
        %v696 = vpop.permute.xlu0 %695
        %697 = vrot.lane.b32.xlu0 %v687, 1
        %v698 = vpop.permute.xlu0 %697
        %699 = vrot.lane.b32.xlu0 %v688, 1
        %v700 = vpop.permute.xlu0 %699
        %701 = vrot.lane.b32.xlu0 %v690, 1
        %v702 = vpop.permute.xlu0 %701
        %703 = vrot.lane.b32.xlu0 %v692, 1
        %v704 = vpop.permute.xlu0 %703
        %705 = vrot.lane.b32.xlu0 %v694, 1
        %v706 = vpop.permute.xlu0 %705
        %vm707 = vcmask 7168
        %v708 = vsel %vm707, %v696, %v698
        %v709 = vsel %vm707, %v698, %v700
        %v710 = vsel %vm707, %v702, %v704
        %v711 = vsel %vm707, %v704, %v706
        %716 = vst [vmem:[#allocation4 + $0x40] sm:$0xf0] %v708
        %717 = vst [vmem:[#allocation4 + $0x48] sm:$0xf0] %v709
        %718 = vst [vmem:[#allocation4 + $0x50] sm:$0xff] %v710
        %719 = vst [vmem:[#allocation4 + $0x58] sm:$0xff] %v711
        %v720 = vld [vmem:[#allocation2 + $0x8] sm:$0xff]
        %v721 = vld [vmem:[#allocation2 + $0x10] sm:$0xff]
        %v722 = vld [vmem:[#allocation2 + $0x28] sm:$0xf]
        %v723 = vld [vmem:[#allocation2 + $0x30] sm:$0xf]
        %724 = vst [vmem:[#allocation4 + $0x60] sm:$0xff] %v720
        %725 = vst [vmem:[#allocation4 + $0x68] sm:$0xff] %v721
        %726 = vst [vmem:[#allocation4 + $0x70] sm:$0xf] %v722
        %727 = vst [vmem:[#allocation4 + $0x78] sm:$0xf] %v723
        %v728 = vld [vmem:[#allocation2 + $0x8] sm:$0xff]
        %v729 = vld [vmem:[#allocation2 + $0x10] sm:$0xff]
        %v730 = vld [vmem:[#allocation2 + $0x18] sm:$0xff]
        %v731 = vld [vmem:[#allocation2 + $0x28] sm:$0xf]
        %v732 = vld [vmem:[#allocation2 + $0x30] sm:$0xf]
        %v733 = vld [vmem:[#allocation2 + $0x38] sm:$0xf]
        %734 = vrot.lane.b32.xlu0 %v608, 1
        %v735 = vpop.permute.xlu0 %734
        %736 = vrot.lane.b32.xlu0 %v612, 1
        %v737 = vpop.permute.xlu0 %736
        %v738 = vsel %vm707, %v735, %v737
        %v742 = vmul.f32 %v728, %v735
        %v743 = vmul.f32 %v729, %v738
        %v744 = vmul.f32 %v730, %v737
        %v745 = vmul.f32 %v731, %v735
        %v746 = vmul.f32 %v732, %v738
        %v747 = vmul.f32 %v733, %v737
        %v754 = vrot.slane %v742, 4
        %v755 = vrot.slane %v743, 4
        %v756 = vrot.slane %v744, 4
        %v757 = vrot.slane %v745, 4
        %v758 = vsel %vm563, %v754, %v757
        %v759 = vrot.slane %v746, 4
        %v760 = vsel %vm563, %v755, %v759
        %v761 = vrot.slane %v747, 4
        %v762 = vsel %vm563, %v756, %v761
        %763 = vrot.lane.b32.xlu0 %v754, 127
        %v764 = vpop.permute.xlu0 %763
        %765 = vrot.lane.b32.xlu0 %v755, 127
        %v766 = vpop.permute.xlu0 %765
        %767 = vrot.lane.b32.xlu0 %v756, 127
        %v768 = vpop.permute.xlu0 %767
        %769 = vrot.lane.b32.xlu0 %v758, 127
        %v770 = vpop.permute.xlu0 %769
        %771 = vrot.lane.b32.xlu0 %v760, 127
        %v772 = vpop.permute.xlu0 %771
        %773 = vrot.lane.b32.xlu0 %v762, 127
        %v774 = vpop.permute.xlu0 %773
        %v775 = vsel %vm669, %v764, %v766
        %v776 = vsel %vm669, %v766, %v768
        %v777 = vsel %vm669, %v770, %v772
        %v778 = vsel %vm669, %v772, %v774
        %783 = vst [vmem:[#allocation4 + $0x70] sm:$0xf0] %v775
        %784 = vst [vmem:[#allocation4 + $0x78] sm:$0xf0] %v776
        %785 = vst [vmem:[#allocation4 + $0x80] sm:$0xff] %v777
        %786 = vst [vmem:[#allocation4 + $0x88] sm:$0xff] %v778
        %v787 = vld [vmem:[#allocation2 + $0x8] sm:$0xff]
        %v788 = vld [vmem:[#allocation2 + $0x10] sm:$0xff]
        %v789 = vld [vmem:[#allocation2 + $0x18] sm:$0xff]
        %v790 = vld [vmem:[#allocation2 + $0x28] sm:$0xf]
        %v791 = vld [vmem:[#allocation2 + $0x30] sm:$0xf]
        %v792 = vld [vmem:[#allocation2 + $0x38] sm:$0xf]
        %793 = vrot.lane.b32.xlu0 %v501, 15
        %v794 = vpop.permute.xlu0 %793
        %795 = vrot.lane.b32.xlu0 %v505, 15
        %v796 = vpop.permute.xlu0 %795
        %v797 = vsel %vm646, %v794, %v796
        %v801 = vmul.f32 %v787, %v794
        %v802 = vmul.f32 %v788, %v797
        %v803 = vmul.f32 %v789, %v796
        %v804 = vmul.f32 %v790, %v794
        %v805 = vmul.f32 %v791, %v797
        %v806 = vmul.f32 %v792, %v796
        %813 = vrot.lane.b32.xlu0 %v801, 113
        %v814 = vpop.permute.xlu0 %813
        %815 = vrot.lane.b32.xlu0 %v802, 113
        %v816 = vpop.permute.xlu0 %815
        %817 = vrot.lane.b32.xlu0 %v803, 113
        %v818 = vpop.permute.xlu0 %817
        %819 = vrot.lane.b32.xlu0 %v804, 113
        %v820 = vpop.permute.xlu0 %819
        %821 = vrot.lane.b32.xlu0 %v805, 113
        %v822 = vpop.permute.xlu0 %821
        %823 = vrot.lane.b32.xlu0 %v806, 113
        %v824 = vpop.permute.xlu0 %823
        %v825 = vsel %vm617, %v814, %v816
        %v826 = vsel %vm617, %v816, %v818
        %v827 = vsel %vm617, %v820, %v822
        %v828 = vsel %vm617, %v822, %v824
        %833 = vst [vmem:[#allocation4 + $0x90] sm:$0xff] %v825
        %834 = vst [vmem:[#allocation4 + $0x98] sm:$0xff] %v826
        %835 = vst [vmem:[#allocation4 + $0xa0] sm:$0xf] %v827
        %836 = vst [vmem:[#allocation4 + $0xa8] sm:$0xf] %v828
        %v837 = vld [vmem:[#allocation2 + $0x8] sm:$0xff]
        %v838 = vld [vmem:[#allocation2 + $0x10] sm:$0xff]
        %v839 = vld [vmem:[#allocation2 + $0x18] sm:$0xff]
        %v840 = vld [vmem:[#allocation2 + $0x28] sm:$0xf]
        %v841 = vld [vmem:[#allocation2 + $0x30] sm:$0xf]
        %v842 = vld [vmem:[#allocation2 + $0x38] sm:$0xf]
        %v849 = vrot.slane %v837, 4
        %v850 = vrot.slane %v838, 4
        %v851 = vrot.slane %v839, 4
        %v852 = vrot.slane %v840, 4
        %v853 = vsel %vm563, %v849, %v852
        %v854 = vrot.slane %v841, 4
        %v855 = vsel %vm563, %v850, %v854
        %v856 = vrot.slane %v842, 4
        %v857 = vsel %vm563, %v851, %v856
        %858 = vrot.lane.b32.xlu0 %v849, 112
        %v859 = vpop.permute.xlu0 %858
        %860 = vrot.lane.b32.xlu0 %v850, 112
        %v861 = vpop.permute.xlu0 %860
        %862 = vrot.lane.b32.xlu0 %v851, 112
        %v863 = vpop.permute.xlu0 %862
        %864 = vrot.lane.b32.xlu0 %v853, 112
        %v865 = vpop.permute.xlu0 %864
        %866 = vrot.lane.b32.xlu0 %v855, 112
        %v867 = vpop.permute.xlu0 %866
        %868 = vrot.lane.b32.xlu0 %v857, 112
        %v869 = vpop.permute.xlu0 %868
        %vm870 = vcmask 916480
        %v871 = vsel %vm870, %v859, %v861
        %v872 = vsel %vm870, %v861, %v863
        %v873 = vsel %vm870, %v865, %v867
        %v874 = vsel %vm870, %v867, %v869
        %879 = vst [vmem:[#allocation4 + $0xa0] sm:$0xf0] %v871
        %880 = vst [vmem:[#allocation4 + $0xa8] sm:$0xf0] %v872
        %881 = vst [vmem:[#allocation4 + $0xb0] sm:$0xff] %v873
        %882 = vst [vmem:[#allocation4 + $0xb8] sm:$0xff] %v874
        %v883 = vld [vmem:[#allocation2 + $0x8] sm:$0xff]
        %v884 = vld [vmem:[#allocation2 + $0x10] sm:$0xff]
        %v885 = vld [vmem:[#allocation2 + $0x18] sm:$0xff]
        %v886 = vld [vmem:[#allocation2 + $0x28] sm:$0xf]
        %v887 = vld [vmem:[#allocation2 + $0x30] sm:$0xf]
        %v888 = vld [vmem:[#allocation2 + $0x38] sm:$0xf]
        %889 = vrot.lane.b32.xlu0 %v608, 17
        %v890 = vpop.permute.xlu0 %889
        %891 = vrot.lane.b32.xlu0 %v612, 17
        %v892 = vpop.permute.xlu0 %891
        %v893 = vsel %vm468, %v890, %v892
        %v897 = vmul.f32 %v883, %v890
        %v898 = vmul.f32 %v884, %v893
        %v899 = vmul.f32 %v885, %v892
        %v900 = vmul.f32 %v886, %v890
        %v901 = vmul.f32 %v887, %v893
        %v902 = vmul.f32 %v888, %v892
        %909 = vrot.lane.b32.xlu0 %v897, 111
        %v910 = vpop.permute.xlu0 %909
        %911 = vrot.lane.b32.xlu0 %v898, 111
        %v912 = vpop.permute.xlu0 %911
        %913 = vrot.lane.b32.xlu0 %v899, 111
        %v914 = vpop.permute.xlu0 %913
        %915 = vrot.lane.b32.xlu0 %v900, 111
        %v916 = vpop.permute.xlu0 %915
        %917 = vrot.lane.b32.xlu0 %v901, 111
        %v918 = vpop.permute.xlu0 %917
        %919 = vrot.lane.b32.xlu0 %v902, 111
        %v920 = vpop.permute.xlu0 %919
        %v921 = vsel %vm510, %v910, %v912
        %v922 = vsel %vm510, %v912, %v914
        %v923 = vsel %vm510, %v916, %v918
        %v924 = vsel %vm510, %v918, %v920
        %929 = vst [vmem:[#allocation4 + $0xc0] sm:$0xff] %v921
        %930 = vst [vmem:[#allocation4 + $0xc8] sm:$0xff] %v922
        %931 = vst [vmem:[#allocation4 + $0xd0] sm:$0xf] %v923
        %932 = vst [vmem:[#allocation4 + $0xd8] sm:$0xf] %v924
        %v933 = vld [vmem:[%s3] sm:$0x3]
        %v934 = vld [vmem:[#allocation4] sm:$0xff]
        %v935 = vld [vmem:[#allocation4 + $0x8] sm:$0xff]
        %v936 = vld [vmem:[#allocation4 + $0x10] sm:$0xff]
        %v937 = vld [vmem:[#allocation4 + $0x18] sm:$0xff]
        %v938 = vld [vmem:[#allocation4 + $0x20] sm:$0xff]
        %v939 = vld [vmem:[#allocation4 + $0x28] sm:$0xff]
        %v940 = vld [vmem:[#allocation4 + $0x30] sm:$0xff]
        %v941 = vld [vmem:[#allocation4 + $0x38] sm:$0xff]
        %v942 = vld [vmem:[#allocation4 + $0x40] sm:$0xff]
        %v943 = vld [vmem:[#allocation4 + $0x48] sm:$0xff]
        %v944 = vld [vmem:[#allocation4 + $0x50] sm:$0xff]
        %v945 = vld [vmem:[#allocation4 + $0x58] sm:$0xff]
        %v946 = vld [vmem:[#allocation4 + $0x60] sm:$0xff]
        %v947 = vld [vmem:[#allocation4 + $0x68] sm:$0xff]
        %v948 = vld [vmem:[#allocation4 + $0x70] sm:$0xff]
        %v949 = vld [vmem:[#allocation4 + $0x78] sm:$0xff]
        %v950 = vld [vmem:[#allocation4 + $0x80] sm:$0xff]
        %v951 = vld [vmem:[#allocation4 + $0x88] sm:$0xff]
        %v952 = vld [vmem:[#allocation4 + $0x90] sm:$0xff]
        %v953 = vld [vmem:[#allocation4 + $0x98] sm:$0xff]
        %v954 = vld [vmem:[#allocation4 + $0xa0] sm:$0xff]
        %v955 = vld [vmem:[#allocation4 + $0xa8] sm:$0xff]
        %v956 = vld [vmem:[#allocation4 + $0xb0] sm:$0xff]
        %v957 = vld [vmem:[#allocation4 + $0xb8] sm:$0xff]
        %v958 = vld [vmem:[#allocation4 + $0xc0] sm:$0xff]
        %v959 = vld [vmem:[#allocation4 + $0xc8] sm:$0xff]
        %v960 = vld [vmem:[#allocation4 + $0xd0] sm:$0xf]
        %v961 = vld [vmem:[#allocation4 + $0xd8] sm:$0xf]
        %v962 = vpack.c.bf16 %v936, %v934
        %v963 = vpack.c.bf16 %v937, %v935
        %v964 = vpack.c.bf16 %v940, %v938
        %v965 = vpack.c.bf16 %v941, %v939
        %v966 = vpack.c.bf16 %v944, %v942
        %v967 = vpack.c.bf16 %v945, %v943
        %v968 = vpack.c.bf16 %v948, %v946
        %v969 = vpack.c.bf16 %v949, %v947
        %v970 = vpack.c.bf16 %v952, %v950
        %v971 = vpack.c.bf16 %v953, %v951
        %v972 = vpack.c.bf16 %v956, %v954
        %v973 = vpack.c.bf16 %v957, %v955
        %v974 = vpack.c.bf16 %v960, %v958
        %v975 = vpack.c.bf16 %v961, %v959
        %v976 = vld [vmem:[%s4] sm:$0xf]
        %978 = vset.pattern.permute.xlu0 0
        %979 = vperm.xlu0 %978, %v976
        %v980 = vpop.permute.xlu0 %979
        %vm982 = vcmask 883712
        %v984 = vsel %vm982, %v933, 0
        %vm986 = vcmask 1045504
        %v988 = vsel %vm986, %v974, 0
        %v991 = vsel %vm986, %v975, 0
        %993 = vmatprep.subr.bf16.mxu0 0
        %994 = vmatpush1.bf16.msra.mxu0 0
        %995 = vmatprep.subr.bf16.mxu0 %v991
        %996 = vmatpush1.bf16.msra.mxu0 %v988
        %997 = vmatprep.subr.bf16.mxu0 %v973
        %998 = vmatpush1.bf16.msra.mxu0 %v972
        %999 = vmatprep.subr.bf16.mxu0 %v971
        %1000 = vmatpush1.bf16.msra.mxu0 %v970
        %1001 = vmatprep.subr.bf16.mxu0 %v969
        %1002 = vmatpush1.bf16.msra.mxu0 %v968
        %1003 = vmatprep.subr.bf16.mxu0 %v967
        %1004 = vmatpush1.bf16.msra.mxu0 %v966
        %1005 = vmatprep.subr.bf16.mxu0 %v965
        %1006 = vmatpush1.bf16.msra.mxu0 %v964
        %1007 = vmatprep.subr.bf16.mxu0 %v963
        %1008 = vmatpush1.bf16.msra.mxu0 %v962
        %1009 = vmatprep.subr.bf16.mxu0 0
        %1010 = vmatpush2.bf16.msra.mxu0 0
        %1011 = vmatprep.subr.bf16.mxu0 0
        %1012 = vmatpush2.bf16.msra.mxu0 0
        %1013 = vmatprep.subr.bf16.mxu0 0
        %1014 = vmatpush2.bf16.msra.mxu0 0
        %1015 = vmatprep.subr.bf16.mxu0 0
        %1016 = vmatpush2.bf16.msra.mxu0 0
        %1017 = vmatprep.subr.bf16.mxu0 0
        %1018 = vmatpush2.bf16.msra.mxu0 0
        %1019 = vmatprep.subr.bf16.mxu0 0
        %1020 = vmatpush2.bf16.msra.mxu0 0
        %1021 = vmatprep.subr.bf16.mxu0 0
        %1022 = vmatpush2.bf16.msra.mxu0 0
        %1023 = vmatprep.subr.bf16.mxu0 0
        %1024 = vmatpush2.bf16.msra.mxu0 0
        %1025 = vmatprep.mubr.bf16.mxu0 0
        %1026 = vmatmul.mubr.bf16.gmra.mxu0 %v984
        %v1027 = vpop.f32.mrf.mxu0
        %v1028 = vadd.f32 %v980, %v1027
        %v1029 = vpop.f32.mrf.mxu0
        %v1030 = vadd.f32 %v980, %v1029
        %v1031 = vpop.f32.mrf.mxu0
        %v1032 = vpop.f32.mrf.mxu0
        %1033 = vdwg.mxu0
        %v1034 = vmax.f32 %v1028, 0.0
        %v1035 = vmax.f32 %v1030, 0.0
        %1036 = vst [vmem:[#allocation3] sm:$0xf] 0.0
        %1037 = vst.msk [vmem:[#allocation3 + $0xc] sm:$0xf] %vm470, 0.0
        %v1040 = vcombine.low %v1034, %v1035
        %1042 = vst [vmem:[#allocation3 + $0x4] sm:$0xff] %v1040
        %v1043 = vld [vmem:[#allocation3] sm:$0xff]
        %v1044 = vld [vmem:[#allocation3 + $0x8] sm:$0xf]
        %v1045 = vcombine.low %v501, %v505
        %1046 = vrot.lane.b32.xlu0 %v1045, 111
        %v1047 = vpop.permute.xlu0 %1046
        %v1048 = vrot.slane %v1047, 4
        %v1049 = vsel %vm510, %v1048, %v1047
        %v1052 = vmul.f32 %v1043, %v1049
        %v1053 = vmul.f32 %v1044, %v1048
        %v1056 = vcombine.high %v1052, %v1052
        %1057 = vrot.lane.b32.xlu0 %v1052, 17
        %v1058 = vpop.permute.xlu0 %1057
        %1059 = vrot.lane.b32.xlu0 %v1056, 17
        %v1060 = vpop.permute.xlu0 %1059
        %1061 = vrot.lane.b32.xlu0 %v1053, 17
        %v1062 = vpop.permute.xlu0 %1061
        %v1063 = vsel %vm468, %v1058, %v1060
        %v1064 = vsel %vm468, %v1060, %v1062
        %1067 = vst [vmem:[#allocation5] sm:$0xf] %v1063
        %1068 = vst [vmem:[#allocation5 + $0x8] sm:$0xf] %v1064
        %v1069 = vld [vmem:[#allocation3] sm:$0xff]
        %v1070 = vld [vmem:[#allocation3 + $0x8] sm:$0xf]
        %v1073 = vcombine.low %v1069, %v1069
        %v1074 = vcombine.low %v1070, %v1070
        %1075 = vrot.lane.b32.xlu0 %v1073, 16
        %v1076 = vpop.permute.xlu0 %1075
        %1077 = vrot.lane.b32.xlu0 %v1069, 16
        %v1078 = vpop.permute.xlu0 %1077
        %1079 = vrot.lane.b32.xlu0 %v1074, 16
        %v1080 = vpop.permute.xlu0 %1079
        %v1081 = vsel %vm585, %v1076, %v1078
        %v1082 = vsel %vm585, %v1078, %v1080
        %1085 = vst [vmem:[#allocation5] sm:$0xf0] %v1081
        %1086 = vst [vmem:[#allocation5 + $0x8] sm:$0xf0] %v1082
        %v1087 = vld [vmem:[#allocation3] sm:$0xff]
        %v1088 = vld [vmem:[#allocation3 + $0x8] sm:$0xf]
        %v1089 = vcombine.low %v608, %v612
        %1090 = vrot.lane.b32.xlu0 %v1089, 113
        %v1091 = vpop.permute.xlu0 %1090
        %v1092 = vrot.slane %v1091, 4
        %v1093 = vsel %vm617, %v1092, %v1091
        %v1096 = vmul.f32 %v1087, %v1093
        %v1097 = vmul.f32 %v1088, %v1092
        %v1100 = vcombine.high %v1096, %v1096
        %1101 = vrot.lane.b32.xlu0 %v1096, 15
        %v1102 = vpop.permute.xlu0 %1101
        %1103 = vrot.lane.b32.xlu0 %v1100, 15
        %v1104 = vpop.permute.xlu0 %1103
        %1105 = vrot.lane.b32.xlu0 %v1097, 15
        %v1106 = vpop.permute.xlu0 %1105
        %v1107 = vsel %vm646, %v1102, %v1104
        %v1108 = vsel %vm646, %v1104, %v1106
        %1111 = vst [vmem:[#allocation5 + $0x10] sm:$0xf] %v1107
        %1112 = vst [vmem:[#allocation5 + $0x18] sm:$0xf] %v1108
        %v1113 = vld [vmem:[#allocation3] sm:$0xff]
        %v1114 = vld [vmem:[#allocation3 + $0x8] sm:$0xf]
        %1115 = vrot.lane.b32.xlu0 %v1045, 127
        %v1116 = vpop.permute.xlu0 %1115
        %v1117 = vrot.slane %v1116, 4
        %v1118 = vsel %vm669, %v1117, %v1116
        %v1121 = vmul.f32 %v1113, %v1118
        %v1122 = vmul.f32 %v1114, %v1117
        %v1125 = vcombine.low %v1121, %v1121
        %v1126 = vcombine.low %v1122, %v1122
        %1127 = vrot.lane.b32.xlu0 %v1125, 1
        %v1128 = vpop.permute.xlu0 %1127
        %1129 = vrot.lane.b32.xlu0 %v1121, 1
        %v1130 = vpop.permute.xlu0 %1129
        %1131 = vrot.lane.b32.xlu0 %v1126, 1
        %v1132 = vpop.permute.xlu0 %1131
        %v1133 = vsel %vm707, %v1128, %v1130
        %v1134 = vsel %vm707, %v1130, %v1132
        %1137 = vst [vmem:[#allocation5 + $0x10] sm:$0xf0] %v1133
        %1138 = vst [vmem:[#allocation5 + $0x18] sm:$0xf0] %v1134
        %v1139 = vld [vmem:[#allocation3 + $0x4] sm:$0xff]
        %v1141 = vcombine.high %v1139, %v1139
        %1143 = vst [vmem:[#allocation5 + $0x20] sm:$0xf] %v1139
        %1144 = vst [vmem:[#allocation5 + $0x28] sm:$0xf] %v1141
        %v1145 = vld [vmem:[#allocation3 + $0x4] sm:$0xff]
        %v1146 = vld [vmem:[#allocation3 + $0xc] sm:$0xf]
        %1147 = vrot.lane.b32.xlu0 %v1089, 1
        %v1148 = vpop.permute.xlu0 %1147
        %v1149 = vrot.slane %v1148, 4
        %v1150 = vsel %vm707, %v1149, %v1148
        %v1153 = vmul.f32 %v1145, %v1150
        %v1154 = vmul.f32 %v1146, %v1149
        %v1157 = vcombine.low %v1153, %v1153
        %v1158 = vcombine.low %v1154, %v1154
        %1159 = vrot.lane.b32.xlu0 %v1157, 127
        %v1160 = vpop.permute.xlu0 %1159
        %1161 = vrot.lane.b32.xlu0 %v1153, 127
        %v1162 = vpop.permute.xlu0 %1161
        %1163 = vrot.lane.b32.xlu0 %v1158, 127
        %v1164 = vpop.permute.xlu0 %1163
        %v1165 = vsel %vm669, %v1160, %v1162
        %v1166 = vsel %vm669, %v1162, %v1164
        %1169 = vst [vmem:[#allocation5 + $0x20] sm:$0xf0] %v1165
        %1170 = vst [vmem:[#allocation5 + $0x28] sm:$0xf0] %v1166
        %v1171 = vld [vmem:[#allocation3 + $0x4] sm:$0xff]
        %v1172 = vld [vmem:[#allocation3 + $0xc] sm:$0xf]
        %1173 = vrot.lane.b32.xlu0 %v1045, 15
        %v1174 = vpop.permute.xlu0 %1173
        %v1175 = vrot.slane %v1174, 4
        %v1176 = vsel %vm646, %v1175, %v1174
        %v1179 = vmul.f32 %v1171, %v1176
        %v1180 = vmul.f32 %v1172, %v1175
        %v1183 = vcombine.high %v1179, %v1179
        %1184 = vrot.lane.b32.xlu0 %v1179, 113
        %v1185 = vpop.permute.xlu0 %1184
        %1186 = vrot.lane.b32.xlu0 %v1183, 113
        %v1187 = vpop.permute.xlu0 %1186
        %1188 = vrot.lane.b32.xlu0 %v1180, 113
        %v1189 = vpop.permute.xlu0 %1188
        %v1190 = vsel %vm617, %v1185, %v1187
        %v1191 = vsel %vm617, %v1187, %v1189
        %1194 = vst [vmem:[#allocation5 + $0x30] sm:$0xf] %v1190
        %1195 = vst [vmem:[#allocation5 + $0x38] sm:$0xf] %v1191
        %v1196 = vld [vmem:[#allocation3 + $0x4] sm:$0xff]
        %v1197 = vld [vmem:[#allocation3 + $0xc] sm:$0xf]
        %v1200 = vcombine.low %v1196, %v1196
        %v1201 = vcombine.low %v1197, %v1197
        %1202 = vrot.lane.b32.xlu0 %v1200, 112
        %v1203 = vpop.permute.xlu0 %1202
        %1204 = vrot.lane.b32.xlu0 %v1196, 112
        %v1205 = vpop.permute.xlu0 %1204
        %1206 = vrot.lane.b32.xlu0 %v1201, 112
        %v1207 = vpop.permute.xlu0 %1206
        %v1208 = vsel %vm870, %v1203, %v1205
        %v1209 = vsel %vm870, %v1205, %v1207
        %1212 = vst [vmem:[#allocation5 + $0x30] sm:$0xf0] %v1208
        %1213 = vst [vmem:[#allocation5 + $0x38] sm:$0xf0] %v1209
        %v1214 = vld [vmem:[#allocation3 + $0x4] sm:$0xff]
        %v1215 = vld [vmem:[#allocation3 + $0xc] sm:$0xf]
        %1216 = vrot.lane.b32.xlu0 %v1089, 17
        %v1217 = vpop.permute.xlu0 %1216
        %v1218 = vrot.slane %v1217, 4
        %v1219 = vsel %vm468, %v1218, %v1217
        %v1222 = vmul.f32 %v1214, %v1219
        %v1223 = vmul.f32 %v1215, %v1218
        %v1226 = vcombine.high %v1222, %v1222
        %1227 = vrot.lane.b32.xlu0 %v1222, 111
        %v1228 = vpop.permute.xlu0 %1227
        %1229 = vrot.lane.b32.xlu0 %v1226, 111
        %v1230 = vpop.permute.xlu0 %1229
        %1231 = vrot.lane.b32.xlu0 %v1223, 111
        %v1232 = vpop.permute.xlu0 %1231
        %v1233 = vsel %vm510, %v1228, %v1230
        %v1234 = vsel %vm510, %v1230, %v1232
        %1237 = vst [vmem:[#allocation5 + $0x40] sm:$0xf] %v1233
        %1238 = vst [vmem:[#allocation5 + $0x48] sm:$0xf] %v1234
        %v1239 = vld [vmem:[%s5] sm:$0x3]
        %v1240 = vld [vmem:[#allocation5] sm:$0xff]
        %v1241 = vld [vmem:[#allocation5 + $0x8] sm:$0xff]
        %v1242 = vld [vmem:[#allocation5 + $0x10] sm:$0xff]
        %v1243 = vld [vmem:[#allocation5 + $0x18] sm:$0xff]
        %v1244 = vld [vmem:[#allocation5 + $0x20] sm:$0xff]
        %v1245 = vld [vmem:[#allocation5 + $0x28] sm:$0xff]
        %v1246 = vld [vmem:[#allocation5 + $0x30] sm:$0xff]
        %v1247 = vld [vmem:[#allocation5 + $0x38] sm:$0xff]
        %v1248 = vld [vmem:[#allocation5 + $0x40] sm:$0xf]
        %v1249 = vld [vmem:[#allocation5 + $0x48] sm:$0xf]
        %v1250 = vpack.c.bf16 %v1242, %v1240
        %v1251 = vpack.c.bf16 %v1243, %v1241
        %v1252 = vpack.c.bf16 %v1246, %v1244
        %v1253 = vpack.c.bf16 %v1247, %v1245
        %v1254 = vpack.c.bf16 %v1248, %v1248
        %v1255 = vpack.c.bf16 %v1249, %v1249
        %v1256 = vld [vmem:[%s6] sm:$0xf]
        %1258 = vset.pattern.permute.xlu0 0
        %1259 = vperm.xlu0 %1258, %v1256
        %v1260 = vpop.permute.xlu0 %1259
        %vm1262 = vcmask 293888
        %v1264 = vsel %vm1262, %v1239, 0
        %vm1266 = vcmask 1041408
        %v1268 = vsel %vm1266, %v1254, 0
        %v1271 = vsel %vm1266, %v1255, 0
        %1273 = vmatprep.subr.bf16.mxu0 0
        %1274 = vmatpush1.bf16.msra.mxu0 0
        %1275 = vmatprep.subr.bf16.mxu0 0
        %1276 = vmatpush1.bf16.msra.mxu0 0
        %1277 = vmatprep.subr.bf16.mxu0 0
        %1278 = vmatpush1.bf16.msra.mxu0 0
        %1279 = vmatprep.subr.bf16.mxu0 0
        %1280 = vmatpush1.bf16.msra.mxu0 0
        %1281 = vmatprep.subr.bf16.mxu0 0
        %1282 = vmatpush1.bf16.msra.mxu0 0
        %1283 = vmatprep.subr.bf16.mxu0 %v1271
        %1284 = vmatpush1.bf16.msra.mxu0 %v1268
        %1285 = vmatprep.subr.bf16.mxu0 %v1253
        %1286 = vmatpush1.bf16.msra.mxu0 %v1252
        %1287 = vmatprep.subr.bf16.mxu0 %v1251
        %1288 = vmatpush1.bf16.msra.mxu0 %v1250
        %1289 = vmatprep.subr.bf16.mxu0 0
        %1290 = vmatpush2.bf16.msra.mxu0 0
        %1291 = vmatprep.subr.bf16.mxu0 0
        %1292 = vmatpush2.bf16.msra.mxu0 0
        %1293 = vmatprep.subr.bf16.mxu0 0
        %1294 = vmatpush2.bf16.msra.mxu0 0
        %1295 = vmatprep.subr.bf16.mxu0 0
        %1296 = vmatpush2.bf16.msra.mxu0 0
        %1297 = vmatprep.subr.bf16.mxu0 0
        %1298 = vmatpush2.bf16.msra.mxu0 0
        %1299 = vmatprep.subr.bf16.mxu0 0
        %1300 = vmatpush2.bf16.msra.mxu0 0
        %1301 = vmatprep.subr.bf16.mxu0 0
        %1302 = vmatpush2.bf16.msra.mxu0 0
        %1303 = vmatprep.subr.bf16.mxu0 0
        %1304 = vmatpush2.bf16.msra.mxu0 0
        %1305 = vmatprep.mubr.bf16.mxu0 0
        %1306 = vmatmul.mubr.bf16.gmra.mxu0 %v1264
        %v1307 = vpop.f32.mrf.mxu0
        %v1308 = vadd.f32 %v1260, %v1307
        %v1309 = vpop.f32.mrf.mxu0
        %v1310 = vadd.f32 %v1260, %v1309
        %v1311 = vpop.f32.mrf.mxu0
        %v1312 = vpop.f32.mrf.mxu0
        %1313 = vdwg.mxu0
        %v1314 = vmax.f32 %v1308, 0.0
        %v1315 = vmax.f32 %v1310, 0.0
        %v1318 = vcombine.low %v1314, %v1315
        %1320 = vst [vmem:[%s372] sm:$0xff] %v1318
        %s1321 = sand.u32 %s214, 1
        %s1322 = scalar_lea.sflag [#allocation8], %s1321
        %s1323 = sand.u32 %s214, 1
        %s1324 = smul.addr %s1323, 8
        %s1325 = scalar_lea.vmem [#allocation12], %s1324
        // Predicated region
        $region65: #{tpu_custom_call.1} parent=51 // pred_check
          %p1326 = pneg %p224
        $region66: #{tpu_custom_call.1} parent=51 // pred_check_branch
          %1328 = sbr.rel (%p1326) target = $region68
        $region67: #{tpu_custom_call.1} parent=51 // pred_region
          %s1330 = ssub.s32 128, 128
          %1331 = vsyncadd %s1322, %s1330
          %s1332 = smul.addr %s28, 2
          %s1333 = smul.addr %s1332, 64
          %s1334 = scalar_lea.hbm %s8, %s1333
          %s1336 = sshll.u32 %s1325, 4
          %s1337 = int_to_ptr.vmem [resolvable:$true] %s1336
          %1339 = dma.vmem_to_hbm [thread:$0]  %s1337, 128, %s1334, %s1322
        $region68: #{tpu_custom_call.1} parent=51 // pred_fallthru
          _
      $region52: #{tpu_custom_call.1} parent=5 // pred_fallthru
        _
      %p1340 = scmp.le.s32.totalorder 2, %s23
      // Predicated region
      $region69: #{tpu_custom_call.1} parent=5 // pred_check
        %p1341 = pneg %p1340
      $region70: #{tpu_custom_call.1} parent=5 // pred_check_branch
        %1343 = sbr.rel (%p1341) target = $region72
      $region71: #{tpu_custom_call.1} parent=5 // pred_region
        %s1344 = ssub.s32 %s23, 2
        // Predicated region
        $region73: #{tpu_custom_call.1} parent=71 // pred_check
          %p1345 = pneg %p230
        $region74: #{tpu_custom_call.1} parent=71 // pred_check_branch
          %1347 = sbr.rel (%p1345) target = $region76
        $region75: #{tpu_custom_call.1} parent=71 // pred_region
          %s1348 = sand.u32 %s215, 1
          %s1349 = scalar_lea.sflag [#allocation8], %s1348
          %s1350 = sand.u32 %s215, 1
          %s1351 = smul.addr %s1350, 8
          %s1352 = scalar_lea.vmem [#allocation12], %s1351
          %1353 = dma.done %s1349, 128
        $region76: #{tpu_custom_call.1} parent=71 // pred_fallthru
          _
      $region72: #{tpu_custom_call.1} parent=5 // pred_fallthru
        _
    $region6: #{tpu_custom_call.1} parent=1 // loop_footer
      %s27 = sadd.s32 1, %s23
    $region7: #{tpu_custom_call.1} parent=1 // loop_footer_branch
      %22 = sbr.rel target = $region3
    $region8: #{tpu_custom_call.1} parent=1 // loop_exit
      _
    %1354 = vsyncpa [#allocation7], 1
    %s1355 = scalar_lea.sflag [#allocation7], 1
    %1356 = vsyncpa %s1355, 1
    %1357 = vsyncpa [#allocation10], 1
    %s1358 = scalar_lea.sflag [#allocation10], 1
    %1359 = vsyncpa %s1358, 1
    %1360 = vsyncpa [#allocation8], 1
    %s1361 = scalar_lea.sflag [#allocation8], 1
    %1362 = vsyncpa %s1361, 1

</llo_original>
